<compile_context>
chip_gen: v7x
topology: tpu7x:2x2x1
jax: 0.10.0
libtpu: 0.0.40
codegen_flags: <defaults>
</compile_context>

<pallas_src>
import functools
import math

import jax
import jax.numpy as jnp
from jax import lax
from jax.experimental import pallas as pl
from jax.experimental.pallas import tpu as pltpu


def _round_up(x, m):
    return ((x + m - 1) // m) * m


def _image_proj_kernel(x_ref, w_ref, b_ref, g_ref, beta_ref, o_ref, *,
                       num_tokens, cross_dim):
    # x_ref: (tm, clip_dim)   w_ref: (clip_dim, tokens*cross_dim)
    # b_ref: (1, tokens*cross_dim)   g_ref/beta_ref: (1, cross_dim)
    # o_ref: (tm, tokens*cross_dim)
    # Feed operands to the MXU in their native dtype; accumulate in f32.
    y = jnp.dot(x_ref[...], w_ref[...], preferred_element_type=jnp.float32)
    y = y + b_ref[...].astype(jnp.float32)

    g = g_ref[...].astype(jnp.float32)       # (1, cross_dim) — hoisted out of loop
    bt = beta_ref[...].astype(jnp.float32)   # (1, cross_dim)

    # LayerNorm over each cross_dim-wide token segment (biased var, eps=1e-5).
    for t in range(num_tokens):
        lo = t * cross_dim
        hi = lo + cross_dim
        seg = y[:, lo:hi]
        mean = jnp.mean(seg, axis=-1, keepdims=True)
        var = jnp.mean((seg - mean) ** 2, axis=-1, keepdims=True)
        norm = (seg - mean) * lax.rsqrt(var + 1e-5)
        o_ref[:, lo:hi] = (norm * g + bt).astype(o_ref.dtype)


def _pick_row_tile(n, tm_max):
    # Multiple of 8 sublanes; try to give the grid >=2 steps (v7x: 2 TCs) while
    # keeping tiles big ("two big steps beat many tiny ones").
    half = _round_up(max(1, -(-n // 2)), 8)
    return max(8, min(tm_max, half))


def image_proj_model(image_embeds, w, b, gamma, beta, *,
                     clip_extra_context_tokens=4, tm=256):
    """Pallas implementation of ImageProjModel.forward.

    image_embeds: (..., clip_embeddings_dim)
    w:            (clip_embeddings_dim, clip_extra_context_tokens * cross_attention_dim)
    b:            (clip_extra_context_tokens * cross_attention_dim,)
    gamma, beta:  (cross_attention_dim,)
    returns:      (N, clip_extra_context_tokens, cross_attention_dim), N = prod(leading dims)
    """
    clip_dim = image_embeds.shape[-1]
    total_out = w.shape[1]
    cross_dim = total_out // clip_extra_context_tokens
    assert cross_dim * clip_extra_context_tokens == total_out

    lead = image_embeds.shape[:-1]
    n = math.prod(lead) if lead else 1
    x2d = image_embeds.reshape(n, clip_dim)

    tm_eff = _pick_row_tile(n, tm)
    n_pad = _round_up(n, tm_eff)
    if n_pad != n:
        x2d = jnp.pad(x2d, ((0, n_pad - n), (0, 0)))

    b2d = b.reshape(1, total_out)
    g2d = gamma.reshape(1, cross_dim)
    be2d = beta.reshape(1, cross_dim)

    itemsize = jnp.dtype(image_embeds.dtype).itemsize
    cost = pl.CostEstimate(
        flops=2 * n_pad * clip_dim * total_out,
        transcendentals=0,
        bytes_accessed=(x2d.size * x2d.dtype.itemsize
                        + w.size * w.dtype.itemsize
                        + b2d.size * b2d.dtype.itemsize
                        + g2d.size * g2d.dtype.itemsize
                        + be2d.size * be2d.dtype.itemsize
                        + n_pad * total_out * itemsize),
    )

    kernel = functools.partial(_image_proj_kernel,
                               num_tokens=clip_extra_context_tokens,
                               cross_dim=cross_dim)

    def build(single_buffer_weights):
        def const_spec(shape):
            # Grid-invariant operands: single-buffer them when supported so the
            # big weight matrix is not double-buffered in VMEM.
            if single_buffer_weights:
                return pl.BlockSpec(shape, lambda i: (0, 0),
                                    pipeline_mode=pl.Buffered(1))
            return pl.BlockSpec(shape, lambda i: (0, 0))

        return pl.pallas_call(
            kernel,
            out_shape=jax.ShapeDtypeStruct((n_pad, total_out), image_embeds.dtype),
            grid_spec=pltpu.PrefetchScalarGridSpec(
                num_scalar_prefetch=0,
                grid=(n_pad // tm_eff,),
                in_specs=[
                    pl.BlockSpec((tm_eff, clip_dim), lambda i: (i, 0)),  # x rows
                    const_spec((clip_dim, total_out)),                   # W
                    const_spec((1, total_out)),                          # b
                    const_spec((1, cross_dim)),                          # ln gamma
                    const_spec((1, cross_dim)),                          # ln beta
                ],
                out_specs=pl.BlockSpec((tm_eff, total_out), lambda i: (i, 0)),
            ),
            compiler_params=pltpu.CompilerParams(
                dimension_semantics=("parallel",),
                vmem_limit_bytes=64 * 1024 * 1024,
            ),
            cost_estimate=cost,
        )

    try:
        out2d = build(True)(x2d, w, b2d, g2d, be2d)
    except Exception:
        # Fallback if pl.Buffered(1) single-buffering is rejected by this jax
        # version: default double-buffering (correct, slightly more VMEM).
        out2d = build(False)(x2d, w, b2d, g2d, be2d)

    out2d = out2d[:n]
    return out2d.reshape(-1, clip_extra_context_tokens, cross_dim)


def _reference(image_embeds, w, b, gamma, beta, tokens):
    x = image_embeds.reshape(-1, image_embeds.shape[-1])
    y = x @ w + b
    y = y.reshape(-1, tokens, gamma.shape[0])
    mean = jnp.mean(y, axis=-1, keepdims=True)
    var = jnp.mean((y - mean) ** 2, axis=-1, keepdims=True)
    return (y - mean) * lax.rsqrt(var + 1e-5) * gamma + beta


if __name__ == "__main__":
    # Small shapes consistent with ImageProjModel: Linear -> reshape -> LayerNorm
    batch = 2
    clip_embeddings_dim = 256
    cross_attention_dim = 128
    clip_extra_context_tokens = 4

    key = jax.random.PRNGKey(0)
    kx, kw, kb = jax.random.split(key, 3)

    image_embeds = jax.random.normal(kx, (batch, clip_embeddings_dim), jnp.float32)

    # Deterministic synthetic parameters (not checkpoint-loaded)
    w = jax.random.normal(
        kw, (clip_embeddings_dim, clip_extra_context_tokens * cross_attention_dim),
        jnp.float32) * 0.02
    b = jax.random.normal(
        kb, (clip_extra_context_tokens * cross_attention_dim,), jnp.float32) * 0.01
    gamma = jnp.ones((cross_attention_dim,), jnp.float32)
    beta = jnp.zeros((cross_attention_dim,), jnp.float32)

    out = image_proj_model(image_embeds, w, b, gamma, beta,
                           clip_extra_context_tokens=clip_extra_context_tokens)
    out = jax.block_until_ready(out)

    ref = _reference(image_embeds, w, b, gamma, beta, clip_extra_context_tokens)
    assert out.shape == (batch, clip_extra_context_tokens, cross_attention_dim), out.shape
    assert jnp.allclose(out, ref, atol=1e-4, rtol=1e-4), "mismatch vs reference"

    print("KERNEL_OK")
</pallas_src>

<mosaic_0001>
module attributes {stable_mosaic.version = 11 : i64} {
  func.func @_image_proj_kernel(%arg0: i32, %arg1: memref<8x256xf32, #tpu.memory_space<vmem>>, %arg2: memref<256x512xf32, #tpu.memory_space<vmem>>, %arg3: memref<1x512xf32, #tpu.memory_space<vmem>>, %arg4: memref<1x128xf32, #tpu.memory_space<vmem>>, %arg5: memref<1x128xf32, #tpu.memory_space<vmem>>, %arg6: memref<8x512xf32, #tpu.memory_space<vmem>>) attributes {dimension_semantics = [#tpu.dimension_semantics<parallel>], iteration_bounds = array<i64: 1>, scalar_prefetch = 0 : i64, scratch_operands = 0 : i64, tpu.core_type = #tpu.core_type<tc>, window_params = [{transform_indices = @transform_0, window_bounds = array<i64: 8, 256>}, {pipeline_mode = #tpu.pipeline_mode<synchronous>, transform_indices = @transform_1, window_bounds = array<i64: 256, 512>}, {pipeline_mode = #tpu.pipeline_mode<synchronous>, transform_indices = @transform_2, window_bounds = array<i64: 1, 512>}, {pipeline_mode = #tpu.pipeline_mode<synchronous>, transform_indices = @transform_3, window_bounds = array<i64: 1, 128>}, {pipeline_mode = #tpu.pipeline_mode<synchronous>, transform_indices = @transform_4, window_bounds = array<i64: 1, 128>}, {transform_indices = @transform_5, window_bounds = array<i64: 8, 512>}]} {
    %c0 = arith.constant 0 : index
    %c0_0 = arith.constant 0 : index
    %0 = vector.load %arg1[%c0, %c0_0] : memref<8x256xf32, #tpu.memory_space<vmem>>, vector<8x256xf32>
    %c0_1 = arith.constant 0 : index
    %c0_2 = arith.constant 0 : index
    %1 = vector.load %arg2[%c0_1, %c0_2] : memref<256x512xf32, #tpu.memory_space<vmem>>, vector<256x512xf32>
    %cst = arith.constant dense<0.000000e+00> : vector<8x512xf32>
    %2 = tpu.matmul %0, %1, %cst {dimension_numbers = #tpu.dot_dimension_numbers<[1], [0], [0], [1], [0, 0, 1, 1], [], []>} : vector<8x256xf32>, vector<256x512xf32>, vector<8x512xf32> -> vector<8x512xf32>
    %c0_3 = arith.constant 0 : index
    %c0_4 = arith.constant 0 : index
    %3 = vector.load %arg3[%c0_3, %c0_4] : memref<1x512xf32, #tpu.memory_space<vmem>>, vector<1x512xf32>
    %4 = vector.broadcast %3 : vector<1x512xf32> to vector<8x512xf32>
    %5 = arith.addf %2, %4 : vector<8x512xf32>
    %c0_5 = arith.constant 0 : index
    %c0_6 = arith.constant 0 : index
    %6 = vector.load %arg4[%c0_5, %c0_6] : memref<1x128xf32, #tpu.memory_space<vmem>>, vector<1x128xf32>
    %c0_7 = arith.constant 0 : index
    %c0_8 = arith.constant 0 : index
    %7 = vector.load %arg5[%c0_7, %c0_8] : memref<1x128xf32, #tpu.memory_space<vmem>>, vector<1x128xf32>
    %8 = vector.extract_strided_slice %5 {offsets = [0, 0], sizes = [8, 128], strides = [1, 1]} : vector<8x512xf32> to vector<8x128xf32>
    %cst_9 = arith.constant dense<0.000000e+00> : vector<8xf32>
    %9 = vector.multi_reduction <add>, %8, %cst_9 [1] : vector<8x128xf32> to vector<8xf32>
    %10 = vector.shape_cast %9 : vector<8xf32> to vector<8x1xf32>
    %cst_10 = arith.constant 1.280000e+02 : f32
    %11 = vector.broadcast %cst_10 : f32 to vector<8x1xf32>
    %12 = arith.divf %10, %11 : vector<8x1xf32>
    %13 = vector.broadcast %12 : vector<8x1xf32> to vector<8x128xf32>
    %14 = arith.subf %8, %13 : vector<8x128xf32>
    %15 = arith.mulf %14, %14 : vector<8x128xf32>
    %cst_11 = arith.constant dense<0.000000e+00> : vector<8xf32>
    %16 = vector.multi_reduction <add>, %15, %cst_11 [1] : vector<8x128xf32> to vector<8xf32>
    %17 = vector.shape_cast %16 : vector<8xf32> to vector<8x1xf32>
    %cst_12 = arith.constant 1.280000e+02 : f32
    %18 = vector.broadcast %cst_12 : f32 to vector<8x1xf32>
    %19 = arith.divf %17, %18 : vector<8x1xf32>
    %20 = vector.broadcast %12 : vector<8x1xf32> to vector<8x128xf32>
    %21 = arith.subf %8, %20 : vector<8x128xf32>
    %cst_13 = arith.constant 9.99999974E-6 : f32
    %22 = vector.broadcast %cst_13 : f32 to vector<8x1xf32>
    %23 = arith.addf %19, %22 : vector<8x1xf32>
    %24 = math.rsqrt %23 : vector<8x1xf32>
    %25 = vector.broadcast %24 : vector<8x1xf32> to vector<8x128xf32>
    %26 = arith.mulf %21, %25 : vector<8x128xf32>
    %27 = vector.broadcast %6 : vector<1x128xf32> to vector<8x128xf32>
    %28 = arith.mulf %26, %27 : vector<8x128xf32>
    %29 = vector.broadcast %7 : vector<1x128xf32> to vector<8x128xf32>
    %30 = arith.addf %28, %29 : vector<8x128xf32>
    %c0_14 = arith.constant 0 : index
    %c0_15 = arith.constant 0 : index
    %31 = vector.load %arg6[%c0_14, %c0_15] : memref<8x512xf32, #tpu.memory_space<vmem>>, vector<8x128xf32>
    tpu.vector_store %arg6[%c0_14, %c0_15], %30 {strides = array<i32>} : memref<8x512xf32, #tpu.memory_space<vmem>>, vector<8x128xf32>,
    %32 = vector.extract_strided_slice %5 {offsets = [0, 128], sizes = [8, 128], strides = [1, 1]} : vector<8x512xf32> to vector<8x128xf32>
    %cst_16 = arith.constant dense<0.000000e+00> : vector<8xf32>
    %33 = vector.multi_reduction <add>, %32, %cst_16 [1] : vector<8x128xf32> to vector<8xf32>
    %34 = vector.shape_cast %33 : vector<8xf32> to vector<8x1xf32>
    %cst_17 = arith.constant 1.280000e+02 : f32
    %35 = vector.broadcast %cst_17 : f32 to vector<8x1xf32>
    %36 = arith.divf %34, %35 : vector<8x1xf32>
    %37 = vector.broadcast %36 : vector<8x1xf32> to vector<8x128xf32>
    %38 = arith.subf %32, %37 : vector<8x128xf32>
    %39 = arith.mulf %38, %38 : vector<8x128xf32>
    %cst_18 = arith.constant dense<0.000000e+00> : vector<8xf32>
    %40 = vector.multi_reduction <add>, %39, %cst_18 [1] : vector<8x128xf32> to vector<8xf32>
    %41 = vector.shape_cast %40 : vector<8xf32> to vector<8x1xf32>
    %cst_19 = arith.constant 1.280000e+02 : f32
    %42 = vector.broadcast %cst_19 : f32 to vector<8x1xf32>
    %43 = arith.divf %41, %42 : vector<8x1xf32>
    %44 = vector.broadcast %36 : vector<8x1xf32> to vector<8x128xf32>
    %45 = arith.subf %32, %44 : vector<8x128xf32>
    %cst_20 = arith.constant 9.99999974E-6 : f32
    %46 = vector.broadcast %cst_20 : f32 to vector<8x1xf32>
    %47 = arith.addf %43, %46 : vector<8x1xf32>
    %48 = math.rsqrt %47 : vector<8x1xf32>
    %49 = vector.broadcast %48 : vector<8x1xf32> to vector<8x128xf32>
    %50 = arith.mulf %45, %49 : vector<8x128xf32>
    %51 = vector.broadcast %6 : vector<1x128xf32> to vector<8x128xf32>
    %52 = arith.mulf %50, %51 : vector<8x128xf32>
    %53 = vector.broadcast %7 : vector<1x128xf32> to vector<8x128xf32>
    %54 = arith.addf %52, %53 : vector<8x128xf32>
    %c0_21 = arith.constant 0 : index
    %c128 = arith.constant 128 : index
    %55 = vector.load %arg6[%c0_21, %c128] : memref<8x512xf32, #tpu.memory_space<vmem>>, vector<8x128xf32>
    tpu.vector_store %arg6[%c0_21, %c128], %54 {strides = array<i32>} : memref<8x512xf32, #tpu.memory_space<vmem>>, vector<8x128xf32>,
    %56 = vector.extract_strided_slice %5 {offsets = [0, 256], sizes = [8, 128], strides = [1, 1]} : vector<8x512xf32> to vector<8x128xf32>
    %cst_22 = arith.constant dense<0.000000e+00> : vector<8xf32>
    %57 = vector.multi_reduction <add>, %56, %cst_22 [1] : vector<8x128xf32> to vector<8xf32>
    %58 = vector.shape_cast %57 : vector<8xf32> to vector<8x1xf32>
    %cst_23 = arith.constant 1.280000e+02 : f32
    %59 = vector.broadcast %cst_23 : f32 to vector<8x1xf32>
    %60 = arith.divf %58, %59 : vector<8x1xf32>
    %61 = vector.broadcast %60 : vector<8x1xf32> to vector<8x128xf32>
    %62 = arith.subf %56, %61 : vector<8x128xf32>
    %63 = arith.mulf %62, %62 : vector<8x128xf32>
    %cst_24 = arith.constant dense<0.000000e+00> : vector<8xf32>
    %64 = vector.multi_reduction <add>, %63, %cst_24 [1] : vector<8x128xf32> to vector<8xf32>
    %65 = vector.shape_cast %64 : vector<8xf32> to vector<8x1xf32>
    %cst_25 = arith.constant 1.280000e+02 : f32
    %66 = vector.broadcast %cst_25 : f32 to vector<8x1xf32>
    %67 = arith.divf %65, %66 : vector<8x1xf32>
    %68 = vector.broadcast %60 : vector<8x1xf32> to vector<8x128xf32>
    %69 = arith.subf %56, %68 : vector<8x128xf32>
    %cst_26 = arith.constant 9.99999974E-6 : f32
    %70 = vector.broadcast %cst_26 : f32 to vector<8x1xf32>
    %71 = arith.addf %67, %70 : vector<8x1xf32>
    %72 = math.rsqrt %71 : vector<8x1xf32>
    %73 = vector.broadcast %72 : vector<8x1xf32> to vector<8x128xf32>
    %74 = arith.mulf %69, %73 : vector<8x128xf32>
    %75 = vector.broadcast %6 : vector<1x128xf32> to vector<8x128xf32>
    %76 = arith.mulf %74, %75 : vector<8x128xf32>
    %77 = vector.broadcast %7 : vector<1x128xf32> to vector<8x128xf32>
    %78 = arith.addf %76, %77 : vector<8x128xf32>
    %c0_27 = arith.constant 0 : index
    %c256 = arith.constant 256 : index
    %79 = vector.load %arg6[%c0_27, %c256] : memref<8x512xf32, #tpu.memory_space<vmem>>, vector<8x128xf32>
    tpu.vector_store %arg6[%c0_27, %c256], %78 {strides = array<i32>} : memref<8x512xf32, #tpu.memory_space<vmem>>, vector<8x128xf32>,
    %80 = vector.extract_strided_slice %5 {offsets = [0, 384], sizes = [8, 128], strides = [1, 1]} : vector<8x512xf32> to vector<8x128xf32>
    %cst_28 = arith.constant dense<0.000000e+00> : vector<8xf32>
    %81 = vector.multi_reduction <add>, %80, %cst_28 [1] : vector<8x128xf32> to vector<8xf32>
    %82 = vector.shape_cast %81 : vector<8xf32> to vector<8x1xf32>
    %cst_29 = arith.constant 1.280000e+02 : f32
    %83 = vector.broadcast %cst_29 : f32 to vector<8x1xf32>
    %84 = arith.divf %82, %83 : vector<8x1xf32>
    %85 = vector.broadcast %84 : vector<8x1xf32> to vector<8x128xf32>
    %86 = arith.subf %80, %85 : vector<8x128xf32>
    %87 = arith.mulf %86, %86 : vector<8x128xf32>
    %cst_30 = arith.constant dense<0.000000e+00> : vector<8xf32>
    %88 = vector.multi_reduction <add>, %87, %cst_30 [1] : vector<8x128xf32> to vector<8xf32>
    %89 = vector.shape_cast %88 : vector<8xf32> to vector<8x1xf32>
    %cst_31 = arith.constant 1.280000e+02 : f32
    %90 = vector.broadcast %cst_31 : f32 to vector<8x1xf32>
    %91 = arith.divf %89, %90 : vector<8x1xf32>
    %92 = vector.broadcast %84 : vector<8x1xf32> to vector<8x128xf32>
    %93 = arith.subf %80, %92 : vector<8x128xf32>
    %cst_32 = arith.constant 9.99999974E-6 : f32
    %94 = vector.broadcast %cst_32 : f32 to vector<8x1xf32>
    %95 = arith.addf %91, %94 : vector<8x1xf32>
    %96 = math.rsqrt %95 : vector<8x1xf32>
    %97 = vector.broadcast %96 : vector<8x1xf32> to vector<8x128xf32>
    %98 = arith.mulf %93, %97 : vector<8x128xf32>
    %99 = vector.broadcast %6 : vector<1x128xf32> to vector<8x128xf32>
    %100 = arith.mulf %98, %99 : vector<8x128xf32>
    %101 = vector.broadcast %7 : vector<1x128xf32> to vector<8x128xf32>
    %102 = arith.addf %100, %101 : vector<8x128xf32>
    %c0_33 = arith.constant 0 : index
    %c384 = arith.constant 384 : index
    %103 = vector.load %arg6[%c0_33, %c384] : memref<8x512xf32, #tpu.memory_space<vmem>>, vector<8x128xf32>
    tpu.vector_store %arg6[%c0_33, %c384], %102 {strides = array<i32>} : memref<8x512xf32, #tpu.memory_space<vmem>>, vector<8x128xf32>,
    return
  }
  func.func @transform_0(%arg0: i32) -> (i32, i32) {
    %c0_i32 = arith.constant 0 : i32
    %c0_i32_0 = arith.constant 0 : i32
    return %arg0, %c0_i32 : i32, i32
  }
  func.func @transform_1(%arg0: i32) -> (i32, i32) {
    %c0_i32 = arith.constant 0 : i32
    %c0_i32_0 = arith.constant 0 : i32
    %c0_i32_1 = arith.constant 0 : i32
    return %c0_i32, %c0_i32_0 : i32, i32
  }
  func.func @transform_2(%arg0: i32) -> (i32, i32) {
    %c0_i32 = arith.constant 0 : i32
    %c0_i32_0 = arith.constant 0 : i32
    %c0_i32_1 = arith.constant 0 : i32
    return %c0_i32, %c0_i32_0 : i32, i32
  }
  func.func @transform_3(%arg0: i32) -> (i32, i32) {
    %c0_i32 = arith.constant 0 : i32
    %c0_i32_0 = arith.constant 0 : i32
    %c0_i32_1 = arith.constant 0 : i32
    return %c0_i32, %c0_i32_0 : i32, i32
  }
  func.func @transform_4(%arg0: i32) -> (i32, i32) {
    %c0_i32 = arith.constant 0 : i32
    %c0_i32_0 = arith.constant 0 : i32
    %c0_i32_1 = arith.constant 0 : i32
    return %c0_i32, %c0_i32_0 : i32, i32
  }
  func.func @transform_5(%arg0: i32) -> (i32, i32) {
    %c0_i32 = arith.constant 0 : i32
    %c0_i32_0 = arith.constant 0 : i32
    return %arg0, %c0_i32 : i32, i32
  }
}

module attributes {stable_mosaic.version = 11 : i64} {
  func.func @_image_proj_kernel(%arg0: i32, %arg1: memref<8x256xf32, #tpu.memory_space<vmem>>, %arg2: memref<256x512xf32, #tpu.memory_space<vmem>>, %arg3: memref<1x512xf32, #tpu.memory_space<vmem>>, %arg4: memref<1x128xf32, #tpu.memory_space<vmem>>, %arg5: memref<1x128xf32, #tpu.memory_space<vmem>>, %arg6: memref<8x512xf32, #tpu.memory_space<vmem>>) attributes {dimension_semantics = [#tpu.dimension_semantics<parallel>], iteration_bounds = array<i64: 1>, scalar_prefetch = 0 : i64, scratch_operands = 0 : i64, tpu.core_type = #tpu.core_type<tc>, window_params = [{transform_indices = @transform_0, window_bounds = array<i64: 8, 256>}, {pipeline_mode = #tpu.pipeline_mode<synchronous>, transform_indices = @transform_1, window_bounds = array<i64: 256, 512>}, {pipeline_mode = #tpu.pipeline_mode<synchronous>, transform_indices = @transform_2, window_bounds = array<i64: 1, 512>}, {pipeline_mode = #tpu.pipeline_mode<synchronous>, transform_indices = @transform_3, window_bounds = array<i64: 1, 128>}, {pipeline_mode = #tpu.pipeline_mode<synchronous>, transform_indices = @transform_4, window_bounds = array<i64: 1, 128>}, {transform_indices = @transform_5, window_bounds = array<i64: 8, 512>}]} {
    %c0 = arith.constant 0 : index
    %c0_0 = arith.constant 0 : index
    %0 = vector.load %arg1[%c0, %c0_0] : memref<8x256xf32, #tpu.memory_space<vmem>>, vector<8x256xf32>
    %c0_1 = arith.constant 0 : index
    %c0_2 = arith.constant 0 : index
    %1 = vector.load %arg2[%c0_1, %c0_2] : memref<256x512xf32, #tpu.memory_space<vmem>>, vector<256x512xf32>
    %cst = arith.constant dense<0.000000e+00> : vector<8x512xf32>
    %2 = tpu.matmul %0, %1, %cst {dimension_numbers = #tpu.dot_dimension_numbers<[1], [0], [0], [1], [0, 0, 1, 1], [], []>} : vector<8x256xf32>, vector<256x512xf32>, vector<8x512xf32> -> vector<8x512xf32>
    %c0_3 = arith.constant 0 : index
    %c0_4 = arith.constant 0 : index
    %3 = vector.load %arg3[%c0_3, %c0_4] : memref<1x512xf32, #tpu.memory_space<vmem>>, vector<1x512xf32>
    %4 = vector.broadcast %3 : vector<1x512xf32> to vector<8x512xf32>
    %5 = arith.addf %2, %4 : vector<8x512xf32>
    %c0_5 = arith.constant 0 : index
    %c0_6 = arith.constant 0 : index
    %6 = vector.load %arg4[%c0_5, %c0_6] : memref<1x128xf32, #tpu.memory_space<vmem>>, vector<1x128xf32>
    %c0_7 = arith.constant 0 : index
    %c0_8 = arith.constant 0 : index
    %7 = vector.load %arg5[%c0_7, %c0_8] : memref<1x128xf32, #tpu.memory_space<vmem>>, vector<1x128xf32>
    %8 = vector.extract_strided_slice %5 {offsets = [0, 0], sizes = [8, 128], strides = [1, 1]} : vector<8x512xf32> to vector<8x128xf32>
    %cst_9 = arith.constant dense<0.000000e+00> : vector<8xf32>
    %9 = vector.multi_reduction <add>, %8, %cst_9 [1] : vector<8x128xf32> to vector<8xf32>
    %10 = vector.shape_cast %9 : vector<8xf32> to vector<8x1xf32>
    %cst_10 = arith.constant 1.280000e+02 : f32
    %11 = vector.broadcast %cst_10 : f32 to vector<8x1xf32>
    %12 = arith.divf %10, %11 : vector<8x1xf32>
    %13 = vector.broadcast %12 : vector<8x1xf32> to vector<8x128xf32>
    %14 = arith.subf %8, %13 : vector<8x128xf32>
    %15 = arith.mulf %14, %14 : vector<8x128xf32>
    %cst_11 = arith.constant dense<0.000000e+00> : vector<8xf32>
    %16 = vector.multi_reduction <add>, %15, %cst_11 [1] : vector<8x128xf32> to vector<8xf32>
    %17 = vector.shape_cast %16 : vector<8xf32> to vector<8x1xf32>
    %cst_12 = arith.constant 1.280000e+02 : f32
    %18 = vector.broadcast %cst_12 : f32 to vector<8x1xf32>
    %19 = arith.divf %17, %18 : vector<8x1xf32>
    %20 = vector.broadcast %12 : vector<8x1xf32> to vector<8x128xf32>
    %21 = arith.subf %8, %20 : vector<8x128xf32>
    %cst_13 = arith.constant 9.99999974E-6 : f32
    %22 = vector.broadcast %cst_13 : f32 to vector<8x1xf32>
    %23 = arith.addf %19, %22 : vector<8x1xf32>
    %24 = math.rsqrt %23 : vector<8x1xf32>
    %25 = vector.broadcast %24 : vector<8x1xf32> to vector<8x128xf32>
    %26 = arith.mulf %21, %25 : vector<8x128xf32>
    %27 = vector.broadcast %6 : vector<1x128xf32> to vector<8x128xf32>
    %28 = arith.mulf %26, %27 : vector<8x128xf32>
    %29 = vector.broadcast %7 : vector<1x128xf32> to vector<8x128xf32>
    %30 = arith.addf %28, %29 : vector<8x128xf32>
    %c0_14 = arith.constant 0 : index
    %c0_15 = arith.constant 0 : index
    %31 = vector.load %arg6[%c0_14, %c0_15] : memref<8x512xf32, #tpu.memory_space<vmem>>, vector<8x128xf32>
    tpu.vector_store %arg6[%c0_14, %c0_15], %30 {strides = array<i32>} : memref<8x512xf32, #tpu.memory_space<vmem>>, vector<8x128xf32>,
    %32 = vector.extract_strided_slice %5 {offsets = [0, 128], sizes = [8, 128], strides = [1, 1]} : vector<8x512xf32> to vector<8x128xf32>
    %cst_16 = arith.constant dense<0.000000e+00> : vector<8xf32>
    %33 = vector.multi_reduction <add>, %32, %cst_16 [1] : vector<8x128xf32> to vector<8xf32>
    %34 = vector.shape_cast %33 : vector<8xf32> to vector<8x1xf32>
    %cst_17 = arith.constant 1.280000e+02 : f32
    %35 = vector.broadcast %cst_17 : f32 to vector<8x1xf32>
    %36 = arith.divf %34, %35 : vector<8x1xf32>
    %37 = vector.broadcast %36 : vector<8x1xf32> to vector<8x128xf32>
    %38 = arith.subf %32, %37 : vector<8x128xf32>
    %39 = arith.mulf %38, %38 : vector<8x128xf32>
    %cst_18 = arith.constant dense<0.000000e+00> : vector<8xf32>
    %40 = vector.multi_reduction <add>, %39, %cst_18 [1] : vector<8x128xf32> to vector<8xf32>
    %41 = vector.shape_cast %40 : vector<8xf32> to vector<8x1xf32>
    %cst_19 = arith.constant 1.280000e+02 : f32
    %42 = vector.broadcast %cst_19 : f32 to vector<8x1xf32>
    %43 = arith.divf %41, %42 : vector<8x1xf32>
    %44 = vector.broadcast %36 : vector<8x1xf32> to vector<8x128xf32>
    %45 = arith.subf %32, %44 : vector<8x128xf32>
    %cst_20 = arith.constant 9.99999974E-6 : f32
    %46 = vector.broadcast %cst_20 : f32 to vector<8x1xf32>
    %47 = arith.addf %43, %46 : vector<8x1xf32>
    %48 = math.rsqrt %47 : vector<8x1xf32>
    %49 = vector.broadcast %48 : vector<8x1xf32> to vector<8x128xf32>
    %50 = arith.mulf %45, %49 : vector<8x128xf32>
    %51 = vector.broadcast %6 : vector<1x128xf32> to vector<8x128xf32>
    %52 = arith.mulf %50, %51 : vector<8x128xf32>
    %53 = vector.broadcast %7 : vector<1x128xf32> to vector<8x128xf32>
    %54 = arith.addf %52, %53 : vector<8x128xf32>
    %c0_21 = arith.constant 0 : index
    %c128 = arith.constant 128 : index
    %55 = vector.load %arg6[%c0_21, %c128] : memref<8x512xf32, #tpu.memory_space<vmem>>, vector<8x128xf32>
    tpu.vector_store %arg6[%c0_21, %c128], %54 {strides = array<i32>} : memref<8x512xf32, #tpu.memory_space<vmem>>, vector<8x128xf32>,
    %56 = vector.extract_strided_slice %5 {offsets = [0, 256], sizes = [8, 128], strides = [1, 1]} : vector<8x512xf32> to vector<8x128xf32>
    %cst_22 = arith.constant dense<0.000000e+00> : vector<8xf32>
    %57 = vector.multi_reduction <add>, %56, %cst_22 [1] : vector<8x128xf32> to vector<8xf32>
    %58 = vector.shape_cast %57 : vector<8xf32> to vector<8x1xf32>
    %cst_23 = arith.constant 1.280000e+02 : f32
    %59 = vector.broadcast %cst_23 : f32 to vector<8x1xf32>
    %60 = arith.divf %58, %59 : vector<8x1xf32>
    %61 = vector.broadcast %60 : vector<8x1xf32> to vector<8x128xf32>
    %62 = arith.subf %56, %61 : vector<8x128xf32>
    %63 = arith.mulf %62, %62 : vector<8x128xf32>
    %cst_24 = arith.constant dense<0.000000e+00> : vector<8xf32>
    %64 = vector.multi_reduction <add>, %63, %cst_24 [1] : vector<8x128xf32> to vector<8xf32>
    %65 = vector.shape_cast %64 : vector<8xf32> to vector<8x1xf32>
    %cst_25 = arith.constant 1.280000e+02 : f32
    %66 = vector.broadcast %cst_25 : f32 to vector<8x1xf32>
    %67 = arith.divf %65, %66 : vector<8x1xf32>
    %68 = vector.broadcast %60 : vector<8x1xf32> to vector<8x128xf32>
    %69 = arith.subf %56, %68 : vector<8x128xf32>
    %cst_26 = arith.constant 9.99999974E-6 : f32
    %70 = vector.broadcast %cst_26 : f32 to vector<8x1xf32>
    %71 = arith.addf %67, %70 : vector<8x1xf32>
    %72 = math.rsqrt %71 : vector<8x1xf32>
    %73 = vector.broadcast %72 : vector<8x1xf32> to vector<8x128xf32>
    %74 = arith.mulf %69, %73 : vector<8x128xf32>
    %75 = vector.broadcast %6 : vector<1x128xf32> to vector<8x128xf32>
    %76 = arith.mulf %74, %75 : vector<8x128xf32>
    %77 = vector.broadcast %7 : vector<1x128xf32> to vector<8x128xf32>
    %78 = arith.addf %76, %77 : vector<8x128xf32>
    %c0_27 = arith.constant 0 : index
    %c256 = arith.constant 256 : index
    %79 = vector.load %arg6[%c0_27, %c256] : memref<8x512xf32, #tpu.memory_space<vmem>>, vector<8x128xf32>
    tpu.vector_store %arg6[%c0_27, %c256], %78 {strides = array<i32>} : memref<8x512xf32, #tpu.memory_space<vmem>>, vector<8x128xf32>,
    %80 = vector.extract_strided_slice %5 {offsets = [0, 384], sizes = [8, 128], strides = [1, 1]} : vector<8x512xf32> to vector<8x128xf32>
    %cst_28 = arith.constant dense<0.000000e+00> : vector<8xf32>
    %81 = vector.multi_reduction <add>, %80, %cst_28 [1] : vector<8x128xf32> to vector<8xf32>
    %82 = vector.shape_cast %81 : vector<8xf32> to vector<8x1xf32>
    %cst_29 = arith.constant 1.280000e+02 : f32
    %83 = vector.broadcast %cst_29 : f32 to vector<8x1xf32>
    %84 = arith.divf %82, %83 : vector<8x1xf32>
    %85 = vector.broadcast %84 : vector<8x1xf32> to vector<8x128xf32>
    %86 = arith.subf %80, %85 : vector<8x128xf32>
    %87 = arith.mulf %86, %86 : vector<8x128xf32>
    %cst_30 = arith.constant dense<0.000000e+00> : vector<8xf32>
    %88 = vector.multi_reduction <add>, %87, %cst_30 [1] : vector<8x128xf32> to vector<8xf32>
    %89 = vector.shape_cast %88 : vector<8xf32> to vector<8x1xf32>
    %cst_31 = arith.constant 1.280000e+02 : f32
    %90 = vector.broadcast %cst_31 : f32 to vector<8x1xf32>
    %91 = arith.divf %89, %90 : vector<8x1xf32>
    %92 = vector.broadcast %84 : vector<8x1xf32> to vector<8x128xf32>
    %93 = arith.subf %80, %92 : vector<8x128xf32>
    %cst_32 = arith.constant 9.99999974E-6 : f32
    %94 = vector.broadcast %cst_32 : f32 to vector<8x1xf32>
    %95 = arith.addf %91, %94 : vector<8x1xf32>
    %96 = math.rsqrt %95 : vector<8x1xf32>
    %97 = vector.broadcast %96 : vector<8x1xf32> to vector<8x128xf32>
    %98 = arith.mulf %93, %97 : vector<8x128xf32>
    %99 = vector.broadcast %6 : vector<1x128xf32> to vector<8x128xf32>
    %100 = arith.mulf %98, %99 : vector<8x128xf32>
    %101 = vector.broadcast %7 : vector<1x128xf32> to vector<8x128xf32>
    %102 = arith.addf %100, %101 : vector<8x128xf32>
    %c0_33 = arith.constant 0 : index
    %c384 = arith.constant 384 : index
    %103 = vector.load %arg6[%c0_33, %c384] : memref<8x512xf32, #tpu.memory_space<vmem>>, vector<8x128xf32>
    tpu.vector_store %arg6[%c0_33, %c384], %102 {strides = array<i32>} : memref<8x512xf32, #tpu.memory_space<vmem>>, vector<8x128xf32>,
    return
  }
  func.func @transform_0(%arg0: i32) -> (i32, i32) {
    %c0_i32 = arith.constant 0 : i32
    %c0_i32_0 = arith.constant 0 : i32
    return %arg0, %c0_i32 : i32, i32
  }
  func.func @transform_1(%arg0: i32) -> (i32, i32) {
    %c0_i32 = arith.constant 0 : i32
    %c0_i32_0 = arith.constant 0 : i32
    %c0_i32_1 = arith.constant 0 : i32
    return %c0_i32, %c0_i32_0 : i32, i32
  }
  func.func @transform_2(%arg0: i32) -> (i32, i32) {
    %c0_i32 = arith.constant 0 : i32
    %c0_i32_0 = arith.constant 0 : i32
    %c0_i32_1 = arith.constant 0 : i32
    return %c0_i32, %c0_i32_0 : i32, i32
  }
  func.func @transform_3(%arg0: i32) -> (i32, i32) {
    %c0_i32 = arith.constant 0 : i32
    %c0_i32_0 = arith.constant 0 : i32
    %c0_i32_1 = arith.constant 0 : i32
    return %c0_i32, %c0_i32_0 : i32, i32
  }
  func.func @transform_4(%arg0: i32) -> (i32, i32) {
    %c0_i32 = arith.constant 0 : i32
    %c0_i32_0 = arith.constant 0 : i32
    %c0_i32_1 = arith.constant 0 : i32
    return %c0_i32, %c0_i32_0 : i32, i32
  }
  func.func @transform_5(%arg0: i32) -> (i32, i32) {
    %c0_i32 = arith.constant 0 : i32
    %c0_i32_0 = arith.constant 0 : i32
    return %arg0, %c0_i32 : i32, i32
  }
}

</mosaic_0001>

<llo_original>
// kernel: tpu_custom_call.1
$region0: #{tpu_custom_call.1}
  #allocation0 [shape = 'u32[]', space=smem, size = 0x4, offset = 0x4, fixed_abs, tag = 'smem constant byte address 0x4 - core index']
  #allocation1 [shape = 'u32[144,128]{1,0:T(1,128)}', space=vmem, size = 0x12000, scoped, tag = 'internal scratch']
  %s0 = inlined_call_operand.hbm [shape: f32[8,256], index: 0, kind: input, shape index: {}]
  %s1 = inlined_call_operand.hbm [shape: f32[256,512], index: 1, kind: input, shape index: {}]
  %s2 = inlined_call_operand.hbm [shape: f32[1,512], index: 2, kind: input, shape index: {}]
  %s3 = inlined_call_operand.hbm [shape: f32[1,128], index: 3, kind: input, shape index: {}]
  %s4 = inlined_call_operand.hbm [shape: f32[1,128], index: 4, kind: input, shape index: {}]
  %s5 = inlined_call_operand.hbm [shape: f32[8,512], index: 5, kind: output, shape index: {}]
  %s6 = sld [smem:[#allocation0]]
  $region50: #{tpu_custom_call.1} parent=0
    _
  %s8 = ssub.s32 1, %s6
  %s9 = scalar_select 0, %s8, %s6
  $region1: #{tpu_custom_call.1} parent=0
    #allocation2 [shape = 'u8[8192]{0}', space=vmem, size = 0x2000, scoped, tag = 'input window, operand 0, single buffered']
    #allocation3 [shape = 's32[1]{0}', space=sflag, size = 0x4, scoped, tag = 'scoped memory for tpu_custom_call.1']
    #allocation4 [shape = 's32[1]{0}', space=sflag, size = 0x4, scoped, tag = 'scoped memory for tpu_custom_call.1']
    #allocation5 [shape = 'u8[524288]{0}', space=vmem, size = 0x80000, scoped, tag = 'input window, operand 1, single buffered']
    #allocation6 [shape = 's32[1]{0}', space=sflag, size = 0x4, scoped, tag = 'scoped memory for tpu_custom_call.1']
    #allocation7 [shape = 'u8[2048]{0}', space=vmem, size = 0x800, scoped, tag = 'input window, operand 2, single buffered']
    #allocation8 [shape = 'u8[512]{0}', space=vmem, size = 0x400, scoped, tag = 'input window, operand 3, single buffered']
    #allocation9 [shape = 's32[1]{0}', space=sflag, size = 0x4, scoped, tag = 'scoped memory for tpu_custom_call.1']
    #allocation10 [shape = 'u8[512]{0}', space=vmem, size = 0x400, scoped, tag = 'input window, operand 4, single buffered']
    #allocation11 [shape = 'u8[16384]{0}', space=vmem, size = 0x4000, scoped, tag = 'output window, operand 0, single buffered']
    %10 = vsyncpa [#allocation3], 0
    %11 = vsyncpa [#allocation6], 0
    %12 = vsyncpa [#allocation9], 0
    %13 = vsyncpa [#allocation4], 0
    // Predicated region
    $region2: #{tpu_custom_call.1} parent=1 // pred_check
      _
    $region3: #{tpu_custom_call.1} parent=1 // pred_check_branch
      %15 = sbr.rel (0) target = $region5
    $region4: #{tpu_custom_call.1} parent=1 // pred_region
      %s17 = ssub.s32 256, 256
      %18 = vsyncadd [#allocation3], %s17
      %s20 = sshll.u32 [#allocation2], 4
      %s21 = int_to_ptr.vmem [resolvable:$true] %s20
      %23 = dma.hbm_to_vmem [thread:$0]  %s0, 256, %s21, [#allocation3]
    $region5: #{tpu_custom_call.1} parent=1 // pred_fallthru
      _
    // Predicated region
    $region6: #{tpu_custom_call.1} parent=1 // pred_check
      _
    $region7: #{tpu_custom_call.1} parent=1 // pred_check_branch
      %25 = sbr.rel (0) target = $region9
    $region8: #{tpu_custom_call.1} parent=1 // pred_region
      %s27 = ssub.s32 16384, 16384
      %28 = vsyncadd [#allocation6], %s27
      %s29 = sshll.u32 [#allocation5], 4
      %s30 = int_to_ptr.vmem [resolvable:$true] %s29
      %35 = dma.hbm_to_vmem [thread:$0]  %s1, 16384, %s30, [#allocation6], 512, 512, 32
    $region9: #{tpu_custom_call.1} parent=1 // pred_fallthru
      _
    // Predicated region
    $region10: #{tpu_custom_call.1} parent=1 // pred_check
      _
    $region11: #{tpu_custom_call.1} parent=1 // pred_check_branch
      %37 = sbr.rel (0) target = $region13
    $region12: #{tpu_custom_call.1} parent=1 // pred_region
      %s39 = ssub.s32 64, 64
      %40 = vsyncadd [#allocation6], %s39
      %s42 = sshll.u32 [#allocation7], 4
      %s43 = int_to_ptr.vmem [resolvable:$true] %s42
      %45 = dma.hbm_to_vmem [thread:$0]  %s2, 64, %s43, [#allocation6]
    $region13: #{tpu_custom_call.1} parent=1 // pred_fallthru
      _
    // Predicated region
    $region14: #{tpu_custom_call.1} parent=1 // pred_check
      _
    $region15: #{tpu_custom_call.1} parent=1 // pred_check_branch
      %47 = sbr.rel (0) target = $region17
    $region16: #{tpu_custom_call.1} parent=1 // pred_region
      %s49 = ssub.s32 16, 16
      %50 = vsyncadd [#allocation9], %s49
      %s52 = sshll.u32 [#allocation8], 4
      %s53 = int_to_ptr.vmem [resolvable:$true] %s52
      %55 = dma.hbm_to_vmem [thread:$0]  %s3, 16, %s53, [#allocation9]
    $region17: #{tpu_custom_call.1} parent=1 // pred_fallthru
      _
    // Predicated region
    $region18: #{tpu_custom_call.1} parent=1 // pred_check
      _
    $region19: #{tpu_custom_call.1} parent=1 // pred_check_branch
      %57 = sbr.rel (0) target = $region21
    $region20: #{tpu_custom_call.1} parent=1 // pred_region
      %s59 = ssub.s32 16, 16
      %60 = vsyncadd [#allocation9], %s59
      %s62 = sshll.u32 [#allocation10], 4
      %s63 = int_to_ptr.vmem [resolvable:$true] %s62
      %65 = dma.hbm_to_vmem [thread:$0]  %s4, 16, %s63, [#allocation9]
    $region21: #{tpu_custom_call.1} parent=1 // pred_fallthru
      _
    // Predicated region
    $region22: #{tpu_custom_call.1} parent=1 // pred_check
      _
    $region23: #{tpu_custom_call.1} parent=1 // pred_check_branch
      %67 = sbr.rel (0) target = $region25
    $region24: #{tpu_custom_call.1} parent=1 // pred_region
      %68 = dma.done [#allocation3], 256
    $region25: #{tpu_custom_call.1} parent=1 // pred_fallthru
      _
    // Predicated region
    $region26: #{tpu_custom_call.1} parent=1 // pred_check
      _
    $region27: #{tpu_custom_call.1} parent=1 // pred_check_branch
      %70 = sbr.rel (0) target = $region29
    $region28: #{tpu_custom_call.1} parent=1 // pred_region
      %71 = dma.done [#allocation6], 16384
    $region29: #{tpu_custom_call.1} parent=1 // pred_fallthru
      _
    // Predicated region
    $region30: #{tpu_custom_call.1} parent=1 // pred_check
      _
    $region31: #{tpu_custom_call.1} parent=1 // pred_check_branch
      %73 = sbr.rel (0) target = $region33
    $region32: #{tpu_custom_call.1} parent=1 // pred_region
      %74 = dma.done [#allocation6], 64
    $region33: #{tpu_custom_call.1} parent=1 // pred_fallthru
      _
    // Predicated region
    $region34: #{tpu_custom_call.1} parent=1 // pred_check
      _
    $region35: #{tpu_custom_call.1} parent=1 // pred_check_branch
      %76 = sbr.rel (0) target = $region37
    $region36: #{tpu_custom_call.1} parent=1 // pred_region
      %77 = dma.done [#allocation9], 16
    $region37: #{tpu_custom_call.1} parent=1 // pred_fallthru
      _
    // Predicated region
    $region38: #{tpu_custom_call.1} parent=1 // pred_check
      _
    $region39: #{tpu_custom_call.1} parent=1 // pred_check_branch
      %79 = sbr.rel (0) target = $region41
    $region40: #{tpu_custom_call.1} parent=1 // pred_region
      %80 = dma.done [#allocation9], 16
    $region41: #{tpu_custom_call.1} parent=1 // pred_fallthru
      _
    %v81 = vld [vmem:[#allocation2] sm:$0xff]
    %v82 = vld [vmem:[#allocation2 + $0x8] sm:$0xff]
    %v83 = vld [vmem:[#allocation5] sm:$0xff]
    %v84 = vld [vmem:[#allocation5 + $0x8] sm:$0xff]
    %v85 = vld [vmem:[#allocation5 + $0x10] sm:$0xff]
    %v86 = vld [vmem:[#allocation5 + $0x18] sm:$0xff]
    %v87 = vld [vmem:[#allocation5 + $0x20] sm:$0xff]
    %v88 = vld [vmem:[#allocation5 + $0x28] sm:$0xff]
    %v89 = vld [vmem:[#allocation5 + $0x30] sm:$0xff]
    %v90 = vld [vmem:[#allocation5 + $0x38] sm:$0xff]
    %v91 = vld [vmem:[#allocation5 + $0x40] sm:$0xff]
    %v92 = vld [vmem:[#allocation5 + $0x48] sm:$0xff]
    %v93 = vld [vmem:[#allocation5 + $0x50] sm:$0xff]
    %v94 = vld [vmem:[#allocation5 + $0x58] sm:$0xff]
    %v95 = vld [vmem:[#allocation5 + $0x60] sm:$0xff]
    %v96 = vld [vmem:[#allocation5 + $0x68] sm:$0xff]
    %v97 = vld [vmem:[#allocation5 + $0x70] sm:$0xff]
    %v98 = vld [vmem:[#allocation5 + $0x78] sm:$0xff]
    %v99 = vld [vmem:[#allocation5 + $0x80] sm:$0xff]
    %v100 = vld [vmem:[#allocation5 + $0x88] sm:$0xff]
    %v101 = vld [vmem:[#allocation5 + $0x90] sm:$0xff]
    %v102 = vld [vmem:[#allocation5 + $0x98] sm:$0xff]
    %v103 = vld [vmem:[#allocation5 + $0xa0] sm:$0xff]
    %v104 = vld [vmem:[#allocation5 + $0xa8] sm:$0xff]
    %v105 = vld [vmem:[#allocation5 + $0xb0] sm:$0xff]
    %v106 = vld [vmem:[#allocation5 + $0xb8] sm:$0xff]
    %v107 = vld [vmem:[#allocation5 + $0xc0] sm:$0xff]
    %v108 = vld [vmem:[#allocation5 + $0xc8] sm:$0xff]
    %v109 = vld [vmem:[#allocation5 + $0xd0] sm:$0xff]
    %v110 = vld [vmem:[#allocation5 + $0xd8] sm:$0xff]
    %v111 = vld [vmem:[#allocation5 + $0xe0] sm:$0xff]
    %v112 = vld [vmem:[#allocation5 + $0xe8] sm:$0xff]
    %v113 = vld [vmem:[#allocation5 + $0xf0] sm:$0xff]
    %v114 = vld [vmem:[#allocation5 + $0xf8] sm:$0xff]
    %v115 = vld [vmem:[#allocation5 + $0x100] sm:$0xff]
    %v116 = vld [vmem:[#allocation5 + $0x108] sm:$0xff]
    %v117 = vld [vmem:[#allocation5 + $0x110] sm:$0xff]
    %v118 = vld [vmem:[#allocation5 + $0x118] sm:$0xff]
    %v119 = vld [vmem:[#allocation5 + $0x120] sm:$0xff]
    %v120 = vld [vmem:[#allocation5 + $0x128] sm:$0xff]
    %v121 = vld [vmem:[#allocation5 + $0x130] sm:$0xff]
    %v122 = vld [vmem:[#allocation5 + $0x138] sm:$0xff]
    %v123 = vld [vmem:[#allocation5 + $0x140] sm:$0xff]
    %v124 = vld [vmem:[#allocation5 + $0x148] sm:$0xff]
    %v125 = vld [vmem:[#allocation5 + $0x150] sm:$0xff]
    %v126 = vld [vmem:[#allocation5 + $0x158] sm:$0xff]
    %v127 = vld [vmem:[#allocation5 + $0x160] sm:$0xff]
    %v128 = vld [vmem:[#allocation5 + $0x168] sm:$0xff]
    %v129 = vld [vmem:[#allocation5 + $0x170] sm:$0xff]
    %v130 = vld [vmem:[#allocation5 + $0x178] sm:$0xff]
    %v131 = vld [vmem:[#allocation5 + $0x180] sm:$0xff]
    %v132 = vld [vmem:[#allocation5 + $0x188] sm:$0xff]
    %v133 = vld [vmem:[#allocation5 + $0x190] sm:$0xff]
    %v134 = vld [vmem:[#allocation5 + $0x198] sm:$0xff]
    %v135 = vld [vmem:[#allocation5 + $0x1a0] sm:$0xff]
    %v136 = vld [vmem:[#allocation5 + $0x1a8] sm:$0xff]
    %v137 = vld [vmem:[#allocation5 + $0x1b0] sm:$0xff]
    %v138 = vld [vmem:[#allocation5 + $0x1b8] sm:$0xff]
    %v139 = vld [vmem:[#allocation5 + $0x1c0] sm:$0xff]
    %v140 = vld [vmem:[#allocation5 + $0x1c8] sm:$0xff]
    %v141 = vld [vmem:[#allocation5 + $0x1d0] sm:$0xff]
    %v142 = vld [vmem:[#allocation5 + $0x1d8] sm:$0xff]
    %v143 = vld [vmem:[#allocation5 + $0x1e0] sm:$0xff]
    %v144 = vld [vmem:[#allocation5 + $0x1e8] sm:$0xff]
    %v145 = vld [vmem:[#allocation5 + $0x1f0] sm:$0xff]
    %v146 = vld [vmem:[#allocation5 + $0x1f8] sm:$0xff]
    %v147 = vld [vmem:[#allocation5 + $0x200] sm:$0xff]
    %v148 = vld [vmem:[#allocation5 + $0x208] sm:$0xff]
    %v149 = vld [vmem:[#allocation5 + $0x210] sm:$0xff]
    %v150 = vld [vmem:[#allocation5 + $0x218] sm:$0xff]
    %v151 = vld [vmem:[#allocation5 + $0x220] sm:$0xff]
    %v152 = vld [vmem:[#allocation5 + $0x228] sm:$0xff]
    %v153 = vld [vmem:[#allocation5 + $0x230] sm:$0xff]
    %v154 = vld [vmem:[#allocation5 + $0x238] sm:$0xff]
    %v155 = vld [vmem:[#allocation5 + $0x240] sm:$0xff]
    %v156 = vld [vmem:[#allocation5 + $0x248] sm:$0xff]
    %v157 = vld [vmem:[#allocation5 + $0x250] sm:$0xff]
    %v158 = vld [vmem:[#allocation5 + $0x258] sm:$0xff]
    %v159 = vld [vmem:[#allocation5 + $0x260] sm:$0xff]
    %v160 = vld [vmem:[#allocation5 + $0x268] sm:$0xff]
    %v161 = vld [vmem:[#allocation5 + $0x270] sm:$0xff]
    %v162 = vld [vmem:[#allocation5 + $0x278] sm:$0xff]
    %v163 = vld [vmem:[#allocation5 + $0x280] sm:$0xff]
    %v164 = vld [vmem:[#allocation5 + $0x288] sm:$0xff]
    %v165 = vld [vmem:[#allocation5 + $0x290] sm:$0xff]
    %v166 = vld [vmem:[#allocation5 + $0x298] sm:$0xff]
    %v167 = vld [vmem:[#allocation5 + $0x2a0] sm:$0xff]
    %v168 = vld [vmem:[#allocation5 + $0x2a8] sm:$0xff]
    %v169 = vld [vmem:[#allocation5 + $0x2b0] sm:$0xff]
    %v170 = vld [vmem:[#allocation5 + $0x2b8] sm:$0xff]
    %v171 = vld [vmem:[#allocation5 + $0x2c0] sm:$0xff]
    %v172 = vld [vmem:[#allocation5 + $0x2c8] sm:$0xff]
    %v173 = vld [vmem:[#allocation5 + $0x2d0] sm:$0xff]
    %v174 = vld [vmem:[#allocation5 + $0x2d8] sm:$0xff]
    %v175 = vld [vmem:[#allocation5 + $0x2e0] sm:$0xff]
    %v176 = vld [vmem:[#allocation5 + $0x2e8] sm:$0xff]
    %v177 = vld [vmem:[#allocation5 + $0x2f0] sm:$0xff]
    %v178 = vld [vmem:[#allocation5 + $0x2f8] sm:$0xff]
    %v179 = vld [vmem:[#allocation5 + $0x300] sm:$0xff]
    %v180 = vld [vmem:[#allocation5 + $0x308] sm:$0xff]
    %v181 = vld [vmem:[#allocation5 + $0x310] sm:$0xff]
    %v182 = vld [vmem:[#allocation5 + $0x318] sm:$0xff]
    %v183 = vld [vmem:[#allocation5 + $0x320] sm:$0xff]
    %v184 = vld [vmem:[#allocation5 + $0x328] sm:$0xff]
    %v185 = vld [vmem:[#allocation5 + $0x330] sm:$0xff]
    %v186 = vld [vmem:[#allocation5 + $0x338] sm:$0xff]
    %v187 = vld [vmem:[#allocation5 + $0x340] sm:$0xff]
    %v188 = vld [vmem:[#allocation5 + $0x348] sm:$0xff]
    %v189 = vld [vmem:[#allocation5 + $0x350] sm:$0xff]
    %v190 = vld [vmem:[#allocation5 + $0x358] sm:$0xff]
    %v191 = vld [vmem:[#allocation5 + $0x360] sm:$0xff]
    %v192 = vld [vmem:[#allocation5 + $0x368] sm:$0xff]
    %v193 = vld [vmem:[#allocation5 + $0x370] sm:$0xff]
    %v194 = vld [vmem:[#allocation5 + $0x378] sm:$0xff]
    %v195 = vld [vmem:[#allocation5 + $0x380] sm:$0xff]
    %v196 = vld [vmem:[#allocation5 + $0x388] sm:$0xff]
    %v197 = vld [vmem:[#allocation5 + $0x390] sm:$0xff]
    %v198 = vld [vmem:[#allocation5 + $0x398] sm:$0xff]
    %v199 = vld [vmem:[#allocation5 + $0x3a0] sm:$0xff]
    %v200 = vld [vmem:[#allocation5 + $0x3a8] sm:$0xff]
    %v201 = vld [vmem:[#allocation5 + $0x3b0] sm:$0xff]
    %v202 = vld [vmem:[#allocation5 + $0x3b8] sm:$0xff]
    %v203 = vld [vmem:[#allocation5 + $0x3c0] sm:$0xff]
    %v204 = vld [vmem:[#allocation5 + $0x3c8] sm:$0xff]
    %v205 = vld [vmem:[#allocation5 + $0x3d0] sm:$0xff]
    %v206 = vld [vmem:[#allocation5 + $0x3d8] sm:$0xff]
    %v207 = vld [vmem:[#allocation5 + $0x3e0] sm:$0xff]
    %v208 = vld [vmem:[#allocation5 + $0x3e8] sm:$0xff]
    %v209 = vld [vmem:[#allocation5 + $0x3f0] sm:$0xff]
    %v210 = vld [vmem:[#allocation5 + $0x3f8] sm:$0xff]
    %v211 = vld [vmem:[#allocation7] sm:$0xf]
    %v213 = vlaneseq
    %v214 = vshrl.u32 %v213, 7
    %v215 = vsub.s32 0, %v214
    %v216 = vrot.slane %v211, %v215
    %v217 = vlaneseq
    %v218 = vshrl.u32 %v217, 7
    %v219 = vsub.s32 1, %v218
    %v220 = vrot.slane %v211, %v219
    %v221 = vlaneseq
    %v222 = vshrl.u32 %v221, 7
    %v223 = vsub.s32 2, %v222
    %v224 = vrot.slane %v211, %v223
    %v225 = vlaneseq
    %v226 = vshrl.u32 %v225, 7
    %v227 = vsub.s32 3, %v226
    %v228 = vrot.slane %v211, %v227
    %233 = vmatprep.subr.mxu0 %v84
    %234 = vmatpush1.msra.mxu0 %v83
    %235 = vmatprep.subr.mxu0 %v88
    %236 = vmatpush1.msra.mxu0 %v87
    %237 = vmatprep.subr.mxu0 %v92
    %238 = vmatpush1.msra.mxu0 %v91
    %239 = vmatprep.subr.mxu0 %v96
    %240 = vmatpush1.msra.mxu0 %v95
    %241 = vmatprep.subr.mxu0 %v100
    %242 = vmatpush1.msra.mxu0 %v99
    %243 = vmatprep.subr.mxu0 %v104
    %244 = vmatpush1.msra.mxu0 %v103
    %245 = vmatprep.subr.mxu0 %v108
    %246 = vmatpush1.msra.mxu0 %v107
    %247 = vmatprep.subr.mxu0 %v112
    %248 = vmatpush1.msra.mxu0 %v111
    %249 = vmatprep.subr.mxu0 %v116
    %250 = vmatpush1.msra.mxu0 %v115
    %251 = vmatprep.subr.mxu0 %v120
    %252 = vmatpush1.msra.mxu0 %v119
    %253 = vmatprep.subr.mxu0 %v124
    %254 = vmatpush1.msra.mxu0 %v123
    %255 = vmatprep.subr.mxu0 %v128
    %256 = vmatpush1.msra.mxu0 %v127
    %257 = vmatprep.subr.mxu0 %v132
    %258 = vmatpush1.msra.mxu0 %v131
    %259 = vmatprep.subr.mxu0 %v136
    %260 = vmatpush1.msra.mxu0 %v135
    %261 = vmatprep.subr.mxu0 %v140
    %262 = vmatpush1.msra.mxu0 %v139
    %263 = vmatprep.subr.mxu0 %v144
    %264 = vmatpush1.msra.mxu0 %v143
    %265 = vmatprep.subr.mxu0 %v148
    %266 = vmatpush1.msra.mxu0 %v147
    %267 = vmatprep.subr.mxu0 %v152
    %268 = vmatpush1.msra.mxu0 %v151
    %269 = vmatprep.subr.mxu0 %v156
    %270 = vmatpush1.msra.mxu0 %v155
    %271 = vmatprep.subr.mxu0 %v160
    %272 = vmatpush1.msra.mxu0 %v159
    %273 = vmatprep.subr.mxu0 %v164
    %274 = vmatpush1.msra.mxu0 %v163
    %275 = vmatprep.subr.mxu0 %v168
    %276 = vmatpush1.msra.mxu0 %v167
    %277 = vmatprep.subr.mxu0 %v172
    %278 = vmatpush1.msra.mxu0 %v171
    %279 = vmatprep.subr.mxu0 %v176
    %280 = vmatpush1.msra.mxu0 %v175
    %281 = vmatprep.subr.mxu0 %v180
    %282 = vmatpush1.msra.mxu0 %v179
    %283 = vmatprep.subr.mxu0 %v184
    %284 = vmatpush1.msra.mxu0 %v183
    %285 = vmatprep.subr.mxu0 %v188
    %286 = vmatpush1.msra.mxu0 %v187
    %287 = vmatprep.subr.mxu0 %v192
    %288 = vmatpush1.msra.mxu0 %v191
    %289 = vmatprep.subr.mxu0 %v196
    %290 = vmatpush1.msra.mxu0 %v195
    %291 = vmatprep.subr.mxu0 %v200
    %292 = vmatpush1.msra.mxu0 %v199
    %293 = vmatprep.subr.mxu0 %v204
    %294 = vmatpush1.msra.mxu0 %v203
    %295 = vmatprep.subr.mxu0 %v208
    %296 = vmatpush1.msra.mxu0 %v207
    %297 = vmatprep.mubr.f32.mxu0 %v82
    %298 = vmatmul.mubr.f32.gmra.mrb[0].mxu0 %v81
    %v299 = vpop.f32.mrb[0].mxu0
    %v300 = vadd.f32 %v216, %v299
    %v301 = vpop.f32.mrb[0].mxu0
    %v302 = vadd.f32 %v220, %v301
    %303 = vdwg.mxu0
    %304 = vmatprep.subr.mxu0 %v86
    %305 = vmatpush1.msra.mxu0 %v85
    %306 = vmatprep.subr.mxu0 %v90
    %307 = vmatpush1.msra.mxu0 %v89
    %308 = vmatprep.subr.mxu0 %v94
    %309 = vmatpush1.msra.mxu0 %v93
    %310 = vmatprep.subr.mxu0 %v98
    %311 = vmatpush1.msra.mxu0 %v97
    %312 = vmatprep.subr.mxu0 %v102
    %313 = vmatpush1.msra.mxu0 %v101
    %314 = vmatprep.subr.mxu0 %v106
    %315 = vmatpush1.msra.mxu0 %v105
    %316 = vmatprep.subr.mxu0 %v110
    %317 = vmatpush1.msra.mxu0 %v109
    %318 = vmatprep.subr.mxu0 %v114
    %319 = vmatpush1.msra.mxu0 %v113
    %320 = vmatprep.subr.mxu0 %v118
    %321 = vmatpush1.msra.mxu0 %v117
    %322 = vmatprep.subr.mxu0 %v122
    %323 = vmatpush1.msra.mxu0 %v121
    %324 = vmatprep.subr.mxu0 %v126
    %325 = vmatpush1.msra.mxu0 %v125
    %326 = vmatprep.subr.mxu0 %v130
    %327 = vmatpush1.msra.mxu0 %v129
    %328 = vmatprep.subr.mxu0 %v134
    %329 = vmatpush1.msra.mxu0 %v133
    %330 = vmatprep.subr.mxu0 %v138
    %331 = vmatpush1.msra.mxu0 %v137
    %332 = vmatprep.subr.mxu0 %v142
    %333 = vmatpush1.msra.mxu0 %v141
    %334 = vmatprep.subr.mxu0 %v146
    %335 = vmatpush1.msra.mxu0 %v145
    %336 = vmatprep.subr.mxu0 %v150
    %337 = vmatpush1.msra.mxu0 %v149
    %338 = vmatprep.subr.mxu0 %v154
    %339 = vmatpush1.msra.mxu0 %v153
    %340 = vmatprep.subr.mxu0 %v158
    %341 = vmatpush1.msra.mxu0 %v157
    %342 = vmatprep.subr.mxu0 %v162
    %343 = vmatpush1.msra.mxu0 %v161
    %344 = vmatprep.subr.mxu0 %v166
    %345 = vmatpush1.msra.mxu0 %v165
    %346 = vmatprep.subr.mxu0 %v170
    %347 = vmatpush1.msra.mxu0 %v169
    %348 = vmatprep.subr.mxu0 %v174
    %349 = vmatpush1.msra.mxu0 %v173
    %350 = vmatprep.subr.mxu0 %v178
    %351 = vmatpush1.msra.mxu0 %v177
    %352 = vmatprep.subr.mxu0 %v182
    %353 = vmatpush1.msra.mxu0 %v181
    %354 = vmatprep.subr.mxu0 %v186
    %355 = vmatpush1.msra.mxu0 %v185
    %356 = vmatprep.subr.mxu0 %v190
    %357 = vmatpush1.msra.mxu0 %v189
    %358 = vmatprep.subr.mxu0 %v194
    %359 = vmatpush1.msra.mxu0 %v193
    %360 = vmatprep.subr.mxu0 %v198
    %361 = vmatpush1.msra.mxu0 %v197
    %362 = vmatprep.subr.mxu0 %v202
    %363 = vmatpush1.msra.mxu0 %v201
    %364 = vmatprep.subr.mxu0 %v206
    %365 = vmatpush1.msra.mxu0 %v205
    %366 = vmatprep.subr.mxu0 %v210
    %367 = vmatpush1.msra.mxu0 %v209
    %368 = vmatprep.mubr.f32.mxu0 %v82
    %369 = vmatmul.mubr.f32.gmra.mrb[0].mxu0 %v81
    %v370 = vpop.f32.mrb[0].mxu0
    %v371 = vadd.f32 %v224, %v370
    %v372 = vpop.f32.mrb[0].mxu0
    %v373 = vadd.f32 %v228, %v372
    %374 = vdwg.mxu0
    %v375 = vld [vmem:[#allocation8] sm:$0x1]
    %v376 = vld [vmem:[#allocation10] sm:$0x1]
    %377 = vadd.xlane.f32.xlu0 %v300
    %v378 = vpop.xlane.xlu0 %377
    %v379 = vrcp.pop 128.0
    %v380 = vmul.f32 %v378, %v379
    %v381 = vsub.f32 %v300, %v380
    %v382 = vmul.f32 %v381, %v381
    %383 = vadd.xlane.f32.xlu0 %v382
    %v384 = vpop.xlane.xlu0 %383
    %v385 = vmul.f32 %v384, %v379
    %v386 = vadd.f32 %v385, 1e-05
    %v387 = vrsqrt.pop %v386
    %v388 = vmul.f32 %v381, %v387
    %v390 = vlaneseq
    %v391 = vshrl.u32 %v390, 7
    %v392 = vsub.s32 0, %v391
    %v393 = vrot.slane %v375, %v392
    %v395 = vmul.f32 %v388, %v393
    %v397 = vlaneseq
    %v398 = vshrl.u32 %v397, 7
    %v399 = vsub.s32 0, %v398
    %v400 = vrot.slane %v376, %v399
    %v402 = vadd.f32 %v395, %v400
    %403 = vst [vmem:[#allocation11] sm:$0xff] %v402
    %404 = vadd.xlane.f32.xlu0 %v302
    %v405 = vpop.xlane.xlu0 %404
    %v406 = vmul.f32 %v405, %v379
    %v407 = vsub.f32 %v302, %v406
    %v408 = vmul.f32 %v407, %v407
    %409 = vadd.xlane.f32.xlu0 %v408
    %v410 = vpop.xlane.xlu0 %409
    %v411 = vmul.f32 %v410, %v379
    %v412 = vadd.f32 %v411, 1e-05
    %v413 = vrsqrt.pop %v412
    %v414 = vmul.f32 %v407, %v413
    %v415 = vmul.f32 %v414, %v393
    %v416 = vadd.f32 %v415, %v400
    %417 = vst [vmem:[#allocation11 + $0x8] sm:$0xff] %v416
    %418 = vadd.xlane.f32.xlu0 %v371
    %v419 = vpop.xlane.xlu0 %418
    %v420 = vmul.f32 %v419, %v379
    %v421 = vsub.f32 %v371, %v420
    %v422 = vmul.f32 %v421, %v421
    %423 = vadd.xlane.f32.xlu0 %v422
    %v424 = vpop.xlane.xlu0 %423
    %v425 = vmul.f32 %v424, %v379
    %v426 = vadd.f32 %v425, 1e-05
    %v427 = vrsqrt.pop %v426
    %v428 = vmul.f32 %v421, %v427
    %v429 = vmul.f32 %v428, %v393
    %v430 = vadd.f32 %v429, %v400
    %431 = vst [vmem:[#allocation11 + $0x10] sm:$0xff] %v430
    %432 = vadd.xlane.f32.xlu0 %v373
    %v433 = vpop.xlane.xlu0 %432
    %v434 = vmul.f32 %v433, %v379
    %v435 = vsub.f32 %v373, %v434
    %v436 = vmul.f32 %v435, %v435
    %437 = vadd.xlane.f32.xlu0 %v436
    %v438 = vpop.xlane.xlu0 %437
    %v439 = vmul.f32 %v438, %v379
    %v440 = vadd.f32 %v439, 1e-05
    %v441 = vrsqrt.pop %v440
    %v442 = vmul.f32 %v435, %v441
    %v443 = vmul.f32 %v442, %v393
    %v444 = vadd.f32 %v443, %v400
    %445 = vst [vmem:[#allocation11 + $0x18] sm:$0xff] %v444
    // Predicated region
    $region42: #{tpu_custom_call.1} parent=1 // pred_check
      _
    $region43: #{tpu_custom_call.1} parent=1 // pred_check_branch
      %447 = sbr.rel (0) target = $region45
    $region44: #{tpu_custom_call.1} parent=1 // pred_region
      %s449 = ssub.s32 512, 512
      %450 = vsyncadd [#allocation4], %s449
      %s452 = sshll.u32 [#allocation11], 4
      %s453 = int_to_ptr.vmem [resolvable:$true] %s452
      %455 = dma.vmem_to_hbm [thread:$0]  %s453, 512, %s5, [#allocation4]
    $region45: #{tpu_custom_call.1} parent=1 // pred_fallthru
      _
    // Predicated region
    $region46: #{tpu_custom_call.1} parent=1 // pred_check
      _
    $region47: #{tpu_custom_call.1} parent=1 // pred_check_branch
      %457 = sbr.rel (0) target = $region49
    $region48: #{tpu_custom_call.1} parent=1 // pred_region
      %458 = dma.done [#allocation4], 512
    $region49: #{tpu_custom_call.1} parent=1 // pred_fallthru
      _
    %459 = vsyncpa [#allocation3], 1
    %460 = vsyncpa [#allocation6], 1
    %461 = vsyncpa [#allocation9], 1
    %462 = vsyncpa [#allocation4], 1

// kernel: tpu_custom_call.1
$region0: #{tpu_custom_call.1}
  #allocation0 [shape = 'u32[]', space=smem, size = 0x4, offset = 0x4, fixed_abs, tag = 'smem constant byte address 0x4 - core index']
  #allocation1 [shape = 'u32[144,128]{1,0:T(1,128)}', space=vmem, size = 0x12000, scoped, tag = 'internal scratch']
  %s0 = inlined_call_operand.hbm [shape: f32[8,256], index: 0, kind: input, shape index: {}]
  %s1 = inlined_call_operand.hbm [shape: f32[256,512], index: 1, kind: input, shape index: {}]
  %s2 = inlined_call_operand.hbm [shape: f32[1,512], index: 2, kind: input, shape index: {}]
  %s3 = inlined_call_operand.hbm [shape: f32[1,128], index: 3, kind: input, shape index: {}]
  %s4 = inlined_call_operand.hbm [shape: f32[1,128], index: 4, kind: input, shape index: {}]
  %s5 = inlined_call_operand.hbm [shape: f32[8,512], index: 5, kind: output, shape index: {}]
  %s6 = sld [smem:[#allocation0]]
  $region50: #{tpu_custom_call.1} parent=0
    _
  %s8 = ssub.s32 1, %s6
  %s9 = scalar_select 0, %s8, %s6
  $region1: #{tpu_custom_call.1} parent=0
    #allocation2 [shape = 'u8[8192]{0}', space=vmem, size = 0x2000, scoped, tag = 'input window, operand 0, single buffered']
    #allocation3 [shape = 's32[1]{0}', space=sflag, size = 0x4, scoped, tag = 'scoped memory for tpu_custom_call.1']
    #allocation4 [shape = 's32[1]{0}', space=sflag, size = 0x4, scoped, tag = 'scoped memory for tpu_custom_call.1']
    #allocation5 [shape = 'u8[524288]{0}', space=vmem, size = 0x80000, scoped, tag = 'input window, operand 1, single buffered']
    #allocation6 [shape = 's32[1]{0}', space=sflag, size = 0x4, scoped, tag = 'scoped memory for tpu_custom_call.1']
    #allocation7 [shape = 'u8[2048]{0}', space=vmem, size = 0x800, scoped, tag = 'input window, operand 2, single buffered']
    #allocation8 [shape = 'u8[512]{0}', space=vmem, size = 0x400, scoped, tag = 'input window, operand 3, single buffered']
    #allocation9 [shape = 's32[1]{0}', space=sflag, size = 0x4, scoped, tag = 'scoped memory for tpu_custom_call.1']
    #allocation10 [shape = 'u8[512]{0}', space=vmem, size = 0x400, scoped, tag = 'input window, operand 4, single buffered']
    #allocation11 [shape = 'u8[16384]{0}', space=vmem, size = 0x4000, scoped, tag = 'output window, operand 0, single buffered']
    %10 = vsyncpa [#allocation3], 0
    %11 = vsyncpa [#allocation6], 0
    %12 = vsyncpa [#allocation9], 0
    %13 = vsyncpa [#allocation4], 0
    // Predicated region
    $region2: #{tpu_custom_call.1} parent=1 // pred_check
      _
    $region3: #{tpu_custom_call.1} parent=1 // pred_check_branch
      %15 = sbr.rel (0) target = $region5
    $region4: #{tpu_custom_call.1} parent=1 // pred_region
      %s17 = ssub.s32 256, 256
      %18 = vsyncadd [#allocation3], %s17
      %s20 = sshll.u32 [#allocation2], 4
      %s21 = int_to_ptr.vmem [resolvable:$true] %s20
      %23 = dma.hbm_to_vmem [thread:$0]  %s0, 256, %s21, [#allocation3]
    $region5: #{tpu_custom_call.1} parent=1 // pred_fallthru
      _
    // Predicated region
    $region6: #{tpu_custom_call.1} parent=1 // pred_check
      _
    $region7: #{tpu_custom_call.1} parent=1 // pred_check_branch
      %25 = sbr.rel (0) target = $region9
    $region8: #{tpu_custom_call.1} parent=1 // pred_region
      %s27 = ssub.s32 16384, 16384
      %28 = vsyncadd [#allocation6], %s27
      %s29 = sshll.u32 [#allocation5], 4
      %s30 = int_to_ptr.vmem [resolvable:$true] %s29
      %35 = dma.hbm_to_vmem [thread:$0]  %s1, 16384, %s30, [#allocation6], 512, 512, 32
    $region9: #{tpu_custom_call.1} parent=1 // pred_fallthru
      _
    // Predicated region
    $region10: #{tpu_custom_call.1} parent=1 // pred_check
      _
    $region11: #{tpu_custom_call.1} parent=1 // pred_check_branch
      %37 = sbr.rel (0) target = $region13
    $region12: #{tpu_custom_call.1} parent=1 // pred_region
      %s39 = ssub.s32 64, 64
      %40 = vsyncadd [#allocation6], %s39
      %s42 = sshll.u32 [#allocation7], 4
      %s43 = int_to_ptr.vmem [resolvable:$true] %s42
      %45 = dma.hbm_to_vmem [thread:$0]  %s2, 64, %s43, [#allocation6]
    $region13: #{tpu_custom_call.1} parent=1 // pred_fallthru
      _
    // Predicated region
    $region14: #{tpu_custom_call.1} parent=1 // pred_check
      _
    $region15: #{tpu_custom_call.1} parent=1 // pred_check_branch
      %47 = sbr.rel (0) target = $region17
    $region16: #{tpu_custom_call.1} parent=1 // pred_region
      %s49 = ssub.s32 16, 16
      %50 = vsyncadd [#allocation9], %s49
      %s52 = sshll.u32 [#allocation8], 4
      %s53 = int_to_ptr.vmem [resolvable:$true] %s52
      %55 = dma.hbm_to_vmem [thread:$0]  %s3, 16, %s53, [#allocation9]
    $region17: #{tpu_custom_call.1} parent=1 // pred_fallthru
      _
    // Predicated region
    $region18: #{tpu_custom_call.1} parent=1 // pred_check
      _
    $region19: #{tpu_custom_call.1} parent=1 // pred_check_branch
      %57 = sbr.rel (0) target = $region21
    $region20: #{tpu_custom_call.1} parent=1 // pred_region
      %s59 = ssub.s32 16, 16
      %60 = vsyncadd [#allocation9], %s59
      %s62 = sshll.u32 [#allocation10], 4
      %s63 = int_to_ptr.vmem [resolvable:$true] %s62
      %65 = dma.hbm_to_vmem [thread:$0]  %s4, 16, %s63, [#allocation9]
    $region21: #{tpu_custom_call.1} parent=1 // pred_fallthru
      _
    // Predicated region
    $region22: #{tpu_custom_call.1} parent=1 // pred_check
      _
    $region23: #{tpu_custom_call.1} parent=1 // pred_check_branch
      %67 = sbr.rel (0) target = $region25
    $region24: #{tpu_custom_call.1} parent=1 // pred_region
      %68 = dma.done [#allocation3], 256
    $region25: #{tpu_custom_call.1} parent=1 // pred_fallthru
      _
    // Predicated region
    $region26: #{tpu_custom_call.1} parent=1 // pred_check
      _
    $region27: #{tpu_custom_call.1} parent=1 // pred_check_branch
      %70 = sbr.rel (0) target = $region29
    $region28: #{tpu_custom_call.1} parent=1 // pred_region
      %71 = dma.done [#allocation6], 16384
    $region29: #{tpu_custom_call.1} parent=1 // pred_fallthru
      _
    // Predicated region
    $region30: #{tpu_custom_call.1} parent=1 // pred_check
      _
    $region31: #{tpu_custom_call.1} parent=1 // pred_check_branch
      %73 = sbr.rel (0) target = $region33
    $region32: #{tpu_custom_call.1} parent=1 // pred_region
      %74 = dma.done [#allocation6], 64
    $region33: #{tpu_custom_call.1} parent=1 // pred_fallthru
      _
    // Predicated region
    $region34: #{tpu_custom_call.1} parent=1 // pred_check
      _
    $region35: #{tpu_custom_call.1} parent=1 // pred_check_branch
      %76 = sbr.rel (0) target = $region37
    $region36: #{tpu_custom_call.1} parent=1 // pred_region
      %77 = dma.done [#allocation9], 16
    $region37: #{tpu_custom_call.1} parent=1 // pred_fallthru
      _
    // Predicated region
    $region38: #{tpu_custom_call.1} parent=1 // pred_check
      _
    $region39: #{tpu_custom_call.1} parent=1 // pred_check_branch
      %79 = sbr.rel (0) target = $region41
    $region40: #{tpu_custom_call.1} parent=1 // pred_region
      %80 = dma.done [#allocation9], 16
    $region41: #{tpu_custom_call.1} parent=1 // pred_fallthru
      _
    %v81 = vld [vmem:[#allocation2] sm:$0xff]
    %v82 = vld [vmem:[#allocation2 + $0x8] sm:$0xff]
    %v83 = vld [vmem:[#allocation5] sm:$0xff]
    %v84 = vld [vmem:[#allocation5 + $0x8] sm:$0xff]
    %v85 = vld [vmem:[#allocation5 + $0x10] sm:$0xff]
    %v86 = vld [vmem:[#allocation5 + $0x18] sm:$0xff]
    %v87 = vld [vmem:[#allocation5 + $0x20] sm:$0xff]
    %v88 = vld [vmem:[#allocation5 + $0x28] sm:$0xff]
    %v89 = vld [vmem:[#allocation5 + $0x30] sm:$0xff]
    %v90 = vld [vmem:[#allocation5 + $0x38] sm:$0xff]
    %v91 = vld [vmem:[#allocation5 + $0x40] sm:$0xff]
    %v92 = vld [vmem:[#allocation5 + $0x48] sm:$0xff]
    %v93 = vld [vmem:[#allocation5 + $0x50] sm:$0xff]
    %v94 = vld [vmem:[#allocation5 + $0x58] sm:$0xff]
    %v95 = vld [vmem:[#allocation5 + $0x60] sm:$0xff]
    %v96 = vld [vmem:[#allocation5 + $0x68] sm:$0xff]
    %v97 = vld [vmem:[#allocation5 + $0x70] sm:$0xff]
    %v98 = vld [vmem:[#allocation5 + $0x78] sm:$0xff]
    %v99 = vld [vmem:[#allocation5 + $0x80] sm:$0xff]
    %v100 = vld [vmem:[#allocation5 + $0x88] sm:$0xff]
    %v101 = vld [vmem:[#allocation5 + $0x90] sm:$0xff]
    %v102 = vld [vmem:[#allocation5 + $0x98] sm:$0xff]
    %v103 = vld [vmem:[#allocation5 + $0xa0] sm:$0xff]
    %v104 = vld [vmem:[#allocation5 + $0xa8] sm:$0xff]
    %v105 = vld [vmem:[#allocation5 + $0xb0] sm:$0xff]
    %v106 = vld [vmem:[#allocation5 + $0xb8] sm:$0xff]
    %v107 = vld [vmem:[#allocation5 + $0xc0] sm:$0xff]
    %v108 = vld [vmem:[#allocation5 + $0xc8] sm:$0xff]
    %v109 = vld [vmem:[#allocation5 + $0xd0] sm:$0xff]
    %v110 = vld [vmem:[#allocation5 + $0xd8] sm:$0xff]
    %v111 = vld [vmem:[#allocation5 + $0xe0] sm:$0xff]
    %v112 = vld [vmem:[#allocation5 + $0xe8] sm:$0xff]
    %v113 = vld [vmem:[#allocation5 + $0xf0] sm:$0xff]
    %v114 = vld [vmem:[#allocation5 + $0xf8] sm:$0xff]
    %v115 = vld [vmem:[#allocation5 + $0x100] sm:$0xff]
    %v116 = vld [vmem:[#allocation5 + $0x108] sm:$0xff]
    %v117 = vld [vmem:[#allocation5 + $0x110] sm:$0xff]
    %v118 = vld [vmem:[#allocation5 + $0x118] sm:$0xff]
    %v119 = vld [vmem:[#allocation5 + $0x120] sm:$0xff]
    %v120 = vld [vmem:[#allocation5 + $0x128] sm:$0xff]
    %v121 = vld [vmem:[#allocation5 + $0x130] sm:$0xff]
    %v122 = vld [vmem:[#allocation5 + $0x138] sm:$0xff]
    %v123 = vld [vmem:[#allocation5 + $0x140] sm:$0xff]
    %v124 = vld [vmem:[#allocation5 + $0x148] sm:$0xff]
    %v125 = vld [vmem:[#allocation5 + $0x150] sm:$0xff]
    %v126 = vld [vmem:[#allocation5 + $0x158] sm:$0xff]
    %v127 = vld [vmem:[#allocation5 + $0x160] sm:$0xff]
    %v128 = vld [vmem:[#allocation5 + $0x168] sm:$0xff]
    %v129 = vld [vmem:[#allocation5 + $0x170] sm:$0xff]
    %v130 = vld [vmem:[#allocation5 + $0x178] sm:$0xff]
    %v131 = vld [vmem:[#allocation5 + $0x180] sm:$0xff]
    %v132 = vld [vmem:[#allocation5 + $0x188] sm:$0xff]
    %v133 = vld [vmem:[#allocation5 + $0x190] sm:$0xff]
    %v134 = vld [vmem:[#allocation5 + $0x198] sm:$0xff]
    %v135 = vld [vmem:[#allocation5 + $0x1a0] sm:$0xff]
    %v136 = vld [vmem:[#allocation5 + $0x1a8] sm:$0xff]
    %v137 = vld [vmem:[#allocation5 + $0x1b0] sm:$0xff]
    %v138 = vld [vmem:[#allocation5 + $0x1b8] sm:$0xff]
    %v139 = vld [vmem:[#allocation5 + $0x1c0] sm:$0xff]
    %v140 = vld [vmem:[#allocation5 + $0x1c8] sm:$0xff]
    %v141 = vld [vmem:[#allocation5 + $0x1d0] sm:$0xff]
    %v142 = vld [vmem:[#allocation5 + $0x1d8] sm:$0xff]
    %v143 = vld [vmem:[#allocation5 + $0x1e0] sm:$0xff]
    %v144 = vld [vmem:[#allocation5 + $0x1e8] sm:$0xff]
    %v145 = vld [vmem:[#allocation5 + $0x1f0] sm:$0xff]
    %v146 = vld [vmem:[#allocation5 + $0x1f8] sm:$0xff]
    %v147 = vld [vmem:[#allocation5 + $0x200] sm:$0xff]
    %v148 = vld [vmem:[#allocation5 + $0x208] sm:$0xff]
    %v149 = vld [vmem:[#allocation5 + $0x210] sm:$0xff]
    %v150 = vld [vmem:[#allocation5 + $0x218] sm:$0xff]
    %v151 = vld [vmem:[#allocation5 + $0x220] sm:$0xff]
    %v152 = vld [vmem:[#allocation5 + $0x228] sm:$0xff]
    %v153 = vld [vmem:[#allocation5 + $0x230] sm:$0xff]
    %v154 = vld [vmem:[#allocation5 + $0x238] sm:$0xff]
    %v155 = vld [vmem:[#allocation5 + $0x240] sm:$0xff]
    %v156 = vld [vmem:[#allocation5 + $0x248] sm:$0xff]
    %v157 = vld [vmem:[#allocation5 + $0x250] sm:$0xff]
    %v158 = vld [vmem:[#allocation5 + $0x258] sm:$0xff]
    %v159 = vld [vmem:[#allocation5 + $0x260] sm:$0xff]
    %v160 = vld [vmem:[#allocation5 + $0x268] sm:$0xff]
    %v161 = vld [vmem:[#allocation5 + $0x270] sm:$0xff]
    %v162 = vld [vmem:[#allocation5 + $0x278] sm:$0xff]
    %v163 = vld [vmem:[#allocation5 + $0x280] sm:$0xff]
    %v164 = vld [vmem:[#allocation5 + $0x288] sm:$0xff]
    %v165 = vld [vmem:[#allocation5 + $0x290] sm:$0xff]
    %v166 = vld [vmem:[#allocation5 + $0x298] sm:$0xff]
    %v167 = vld [vmem:[#allocation5 + $0x2a0] sm:$0xff]
    %v168 = vld [vmem:[#allocation5 + $0x2a8] sm:$0xff]
    %v169 = vld [vmem:[#allocation5 + $0x2b0] sm:$0xff]
    %v170 = vld [vmem:[#allocation5 + $0x2b8] sm:$0xff]
    %v171 = vld [vmem:[#allocation5 + $0x2c0] sm:$0xff]
    %v172 = vld [vmem:[#allocation5 + $0x2c8] sm:$0xff]
    %v173 = vld [vmem:[#allocation5 + $0x2d0] sm:$0xff]
    %v174 = vld [vmem:[#allocation5 + $0x2d8] sm:$0xff]
    %v175 = vld [vmem:[#allocation5 + $0x2e0] sm:$0xff]
    %v176 = vld [vmem:[#allocation5 + $0x2e8] sm:$0xff]
    %v177 = vld [vmem:[#allocation5 + $0x2f0] sm:$0xff]
    %v178 = vld [vmem:[#allocation5 + $0x2f8] sm:$0xff]
    %v179 = vld [vmem:[#allocation5 + $0x300] sm:$0xff]
    %v180 = vld [vmem:[#allocation5 + $0x308] sm:$0xff]
    %v181 = vld [vmem:[#allocation5 + $0x310] sm:$0xff]
    %v182 = vld [vmem:[#allocation5 + $0x318] sm:$0xff]
    %v183 = vld [vmem:[#allocation5 + $0x320] sm:$0xff]
    %v184 = vld [vmem:[#allocation5 + $0x328] sm:$0xff]
    %v185 = vld [vmem:[#allocation5 + $0x330] sm:$0xff]
    %v186 = vld [vmem:[#allocation5 + $0x338] sm:$0xff]
    %v187 = vld [vmem:[#allocation5 + $0x340] sm:$0xff]
    %v188 = vld [vmem:[#allocation5 + $0x348] sm:$0xff]
    %v189 = vld [vmem:[#allocation5 + $0x350] sm:$0xff]
    %v190 = vld [vmem:[#allocation5 + $0x358] sm:$0xff]
    %v191 = vld [vmem:[#allocation5 + $0x360] sm:$0xff]
    %v192 = vld [vmem:[#allocation5 + $0x368] sm:$0xff]
    %v193 = vld [vmem:[#allocation5 + $0x370] sm:$0xff]
    %v194 = vld [vmem:[#allocation5 + $0x378] sm:$0xff]
    %v195 = vld [vmem:[#allocation5 + $0x380] sm:$0xff]
    %v196 = vld [vmem:[#allocation5 + $0x388] sm:$0xff]
    %v197 = vld [vmem:[#allocation5 + $0x390] sm:$0xff]
    %v198 = vld [vmem:[#allocation5 + $0x398] sm:$0xff]
    %v199 = vld [vmem:[#allocation5 + $0x3a0] sm:$0xff]
    %v200 = vld [vmem:[#allocation5 + $0x3a8] sm:$0xff]
    %v201 = vld [vmem:[#allocation5 + $0x3b0] sm:$0xff]
    %v202 = vld [vmem:[#allocation5 + $0x3b8] sm:$0xff]
    %v203 = vld [vmem:[#allocation5 + $0x3c0] sm:$0xff]
    %v204 = vld [vmem:[#allocation5 + $0x3c8] sm:$0xff]
    %v205 = vld [vmem:[#allocation5 + $0x3d0] sm:$0xff]
    %v206 = vld [vmem:[#allocation5 + $0x3d8] sm:$0xff]
    %v207 = vld [vmem:[#allocation5 + $0x3e0] sm:$0xff]
    %v208 = vld [vmem:[#allocation5 + $0x3e8] sm:$0xff]
    %v209 = vld [vmem:[#allocation5 + $0x3f0] sm:$0xff]
    %v210 = vld [vmem:[#allocation5 + $0x3f8] sm:$0xff]
    %v211 = vld [vmem:[#allocation7] sm:$0xf]
    %v213 = vlaneseq
    %v214 = vshrl.u32 %v213, 7
    %v215 = vsub.s32 0, %v214
    %v216 = vrot.slane %v211, %v215
    %v217 = vlaneseq
    %v218 = vshrl.u32 %v217, 7
    %v219 = vsub.s32 1, %v218
    %v220 = vrot.slane %v211, %v219
    %v221 = vlaneseq
    %v222 = vshrl.u32 %v221, 7
    %v223 = vsub.s32 2, %v222
    %v224 = vrot.slane %v211, %v223
    %v225 = vlaneseq
    %v226 = vshrl.u32 %v225, 7
    %v227 = vsub.s32 3, %v226
    %v228 = vrot.slane %v211, %v227
    %233 = vmatprep.subr.mxu0 %v84
    %234 = vmatpush1.msra.mxu0 %v83
    %235 = vmatprep.subr.mxu0 %v88
    %236 = vmatpush1.msra.mxu0 %v87
    %237 = vmatprep.subr.mxu0 %v92
    %238 = vmatpush1.msra.mxu0 %v91
    %239 = vmatprep.subr.mxu0 %v96
    %240 = vmatpush1.msra.mxu0 %v95
    %241 = vmatprep.subr.mxu0 %v100
    %242 = vmatpush1.msra.mxu0 %v99
    %243 = vmatprep.subr.mxu0 %v104
    %244 = vmatpush1.msra.mxu0 %v103
    %245 = vmatprep.subr.mxu0 %v108
    %246 = vmatpush1.msra.mxu0 %v107
    %247 = vmatprep.subr.mxu0 %v112
    %248 = vmatpush1.msra.mxu0 %v111
    %249 = vmatprep.subr.mxu0 %v116
    %250 = vmatpush1.msra.mxu0 %v115
    %251 = vmatprep.subr.mxu0 %v120
    %252 = vmatpush1.msra.mxu0 %v119
    %253 = vmatprep.subr.mxu0 %v124
    %254 = vmatpush1.msra.mxu0 %v123
    %255 = vmatprep.subr.mxu0 %v128
    %256 = vmatpush1.msra.mxu0 %v127
    %257 = vmatprep.subr.mxu0 %v132
    %258 = vmatpush1.msra.mxu0 %v131
    %259 = vmatprep.subr.mxu0 %v136
    %260 = vmatpush1.msra.mxu0 %v135
    %261 = vmatprep.subr.mxu0 %v140
    %262 = vmatpush1.msra.mxu0 %v139
    %263 = vmatprep.subr.mxu0 %v144
    %264 = vmatpush1.msra.mxu0 %v143
    %265 = vmatprep.subr.mxu0 %v148
    %266 = vmatpush1.msra.mxu0 %v147
    %267 = vmatprep.subr.mxu0 %v152
    %268 = vmatpush1.msra.mxu0 %v151
    %269 = vmatprep.subr.mxu0 %v156
    %270 = vmatpush1.msra.mxu0 %v155
    %271 = vmatprep.subr.mxu0 %v160
    %272 = vmatpush1.msra.mxu0 %v159
    %273 = vmatprep.subr.mxu0 %v164
    %274 = vmatpush1.msra.mxu0 %v163
    %275 = vmatprep.subr.mxu0 %v168
    %276 = vmatpush1.msra.mxu0 %v167
    %277 = vmatprep.subr.mxu0 %v172
    %278 = vmatpush1.msra.mxu0 %v171
    %279 = vmatprep.subr.mxu0 %v176
    %280 = vmatpush1.msra.mxu0 %v175
    %281 = vmatprep.subr.mxu0 %v180
    %282 = vmatpush1.msra.mxu0 %v179
    %283 = vmatprep.subr.mxu0 %v184
    %284 = vmatpush1.msra.mxu0 %v183
    %285 = vmatprep.subr.mxu0 %v188
    %286 = vmatpush1.msra.mxu0 %v187
    %287 = vmatprep.subr.mxu0 %v192
    %288 = vmatpush1.msra.mxu0 %v191
    %289 = vmatprep.subr.mxu0 %v196
    %290 = vmatpush1.msra.mxu0 %v195
    %291 = vmatprep.subr.mxu0 %v200
    %292 = vmatpush1.msra.mxu0 %v199
    %293 = vmatprep.subr.mxu0 %v204
    %294 = vmatpush1.msra.mxu0 %v203
    %295 = vmatprep.subr.mxu0 %v208
    %296 = vmatpush1.msra.mxu0 %v207
    %297 = vmatprep.mubr.f32.mxu0 %v82
    %298 = vmatmul.mubr.f32.gmra.mrb[0].mxu0 %v81
    %v299 = vpop.f32.mrb[0].mxu0
    %v300 = vadd.f32 %v216, %v299
    %v301 = vpop.f32.mrb[0].mxu0
    %v302 = vadd.f32 %v220, %v301
    %303 = vdwg.mxu0
    %304 = vmatprep.subr.mxu0 %v86
    %305 = vmatpush1.msra.mxu0 %v85
    %306 = vmatprep.subr.mxu0 %v90
    %307 = vmatpush1.msra.mxu0 %v89
    %308 = vmatprep.subr.mxu0 %v94
    %309 = vmatpush1.msra.mxu0 %v93
    %310 = vmatprep.subr.mxu0 %v98
    %311 = vmatpush1.msra.mxu0 %v97
    %312 = vmatprep.subr.mxu0 %v102
    %313 = vmatpush1.msra.mxu0 %v101
    %314 = vmatprep.subr.mxu0 %v106
    %315 = vmatpush1.msra.mxu0 %v105
    %316 = vmatprep.subr.mxu0 %v110
    %317 = vmatpush1.msra.mxu0 %v109
    %318 = vmatprep.subr.mxu0 %v114
    %319 = vmatpush1.msra.mxu0 %v113
    %320 = vmatprep.subr.mxu0 %v118
    %321 = vmatpush1.msra.mxu0 %v117
    %322 = vmatprep.subr.mxu0 %v122
    %323 = vmatpush1.msra.mxu0 %v121
    %324 = vmatprep.subr.mxu0 %v126
    %325 = vmatpush1.msra.mxu0 %v125
    %326 = vmatprep.subr.mxu0 %v130
    %327 = vmatpush1.msra.mxu0 %v129
    %328 = vmatprep.subr.mxu0 %v134
    %329 = vmatpush1.msra.mxu0 %v133
    %330 = vmatprep.subr.mxu0 %v138
    %331 = vmatpush1.msra.mxu0 %v137
    %332 = vmatprep.subr.mxu0 %v142
    %333 = vmatpush1.msra.mxu0 %v141
    %334 = vmatprep.subr.mxu0 %v146
    %335 = vmatpush1.msra.mxu0 %v145
    %336 = vmatprep.subr.mxu0 %v150
    %337 = vmatpush1.msra.mxu0 %v149
    %338 = vmatprep.subr.mxu0 %v154
    %339 = vmatpush1.msra.mxu0 %v153
    %340 = vmatprep.subr.mxu0 %v158
    %341 = vmatpush1.msra.mxu0 %v157
    %342 = vmatprep.subr.mxu0 %v162
    %343 = vmatpush1.msra.mxu0 %v161
    %344 = vmatprep.subr.mxu0 %v166
    %345 = vmatpush1.msra.mxu0 %v165
    %346 = vmatprep.subr.mxu0 %v170
    %347 = vmatpush1.msra.mxu0 %v169
    %348 = vmatprep.subr.mxu0 %v174
    %349 = vmatpush1.msra.mxu0 %v173
    %350 = vmatprep.subr.mxu0 %v178
    %351 = vmatpush1.msra.mxu0 %v177
    %352 = vmatprep.subr.mxu0 %v182
    %353 = vmatpush1.msra.mxu0 %v181
    %354 = vmatprep.subr.mxu0 %v186
    %355 = vmatpush1.msra.mxu0 %v185
    %356 = vmatprep.subr.mxu0 %v190
    %357 = vmatpush1.msra.mxu0 %v189
    %358 = vmatprep.subr.mxu0 %v194
    %359 = vmatpush1.msra.mxu0 %v193
    %360 = vmatprep.subr.mxu0 %v198
    %361 = vmatpush1.msra.mxu0 %v197
    %362 = vmatprep.subr.mxu0 %v202
    %363 = vmatpush1.msra.mxu0 %v201
    %364 = vmatprep.subr.mxu0 %v206
    %365 = vmatpush1.msra.mxu0 %v205
    %366 = vmatprep.subr.mxu0 %v210
    %367 = vmatpush1.msra.mxu0 %v209
    %368 = vmatprep.mubr.f32.mxu0 %v82
    %369 = vmatmul.mubr.f32.gmra.mrb[0].mxu0 %v81
    %v370 = vpop.f32.mrb[0].mxu0
    %v371 = vadd.f32 %v224, %v370
    %v372 = vpop.f32.mrb[0].mxu0
    %v373 = vadd.f32 %v228, %v372
    %374 = vdwg.mxu0
    %v375 = vld [vmem:[#allocation8] sm:$0x1]
    %v376 = vld [vmem:[#allocation10] sm:$0x1]
    %377 = vadd.xlane.f32.xlu0 %v300
    %v378 = vpop.xlane.xlu0 %377
    %v379 = vrcp.pop 128.0
    %v380 = vmul.f32 %v378, %v379
    %v381 = vsub.f32 %v300, %v380
    %v382 = vmul.f32 %v381, %v381
    %383 = vadd.xlane.f32.xlu0 %v382
    %v384 = vpop.xlane.xlu0 %383
    %v385 = vmul.f32 %v384, %v379
    %v386 = vadd.f32 %v385, 1e-05
    %v387 = vrsqrt.pop %v386
    %v388 = vmul.f32 %v381, %v387
    %v390 = vlaneseq
    %v391 = vshrl.u32 %v390, 7
    %v392 = vsub.s32 0, %v391
    %v393 = vrot.slane %v375, %v392
    %v395 = vmul.f32 %v388, %v393
    %v397 = vlaneseq
    %v398 = vshrl.u32 %v397, 7
    %v399 = vsub.s32 0, %v398
    %v400 = vrot.slane %v376, %v399
    %v402 = vadd.f32 %v395, %v400
    %403 = vst [vmem:[#allocation11] sm:$0xff] %v402
    %404 = vadd.xlane.f32.xlu0 %v302
    %v405 = vpop.xlane.xlu0 %404
    %v406 = vmul.f32 %v405, %v379
    %v407 = vsub.f32 %v302, %v406
    %v408 = vmul.f32 %v407, %v407
    %409 = vadd.xlane.f32.xlu0 %v408
    %v410 = vpop.xlane.xlu0 %409
    %v411 = vmul.f32 %v410, %v379
    %v412 = vadd.f32 %v411, 1e-05
    %v413 = vrsqrt.pop %v412
    %v414 = vmul.f32 %v407, %v413
    %v415 = vmul.f32 %v414, %v393
    %v416 = vadd.f32 %v415, %v400
    %417 = vst [vmem:[#allocation11 + $0x8] sm:$0xff] %v416
    %418 = vadd.xlane.f32.xlu0 %v371
    %v419 = vpop.xlane.xlu0 %418
    %v420 = vmul.f32 %v419, %v379
    %v421 = vsub.f32 %v371, %v420
    %v422 = vmul.f32 %v421, %v421
    %423 = vadd.xlane.f32.xlu0 %v422
    %v424 = vpop.xlane.xlu0 %423
    %v425 = vmul.f32 %v424, %v379
    %v426 = vadd.f32 %v425, 1e-05
    %v427 = vrsqrt.pop %v426
    %v428 = vmul.f32 %v421, %v427
    %v429 = vmul.f32 %v428, %v393
    %v430 = vadd.f32 %v429, %v400
    %431 = vst [vmem:[#allocation11 + $0x10] sm:$0xff] %v430
    %432 = vadd.xlane.f32.xlu0 %v373
    %v433 = vpop.xlane.xlu0 %432
    %v434 = vmul.f32 %v433, %v379
    %v435 = vsub.f32 %v373, %v434
    %v436 = vmul.f32 %v435, %v435
    %437 = vadd.xlane.f32.xlu0 %v436
    %v438 = vpop.xlane.xlu0 %437
    %v439 = vmul.f32 %v438, %v379
    %v440 = vadd.f32 %v439, 1e-05
    %v441 = vrsqrt.pop %v440
    %v442 = vmul.f32 %v435, %v441
    %v443 = vmul.f32 %v442, %v393
    %v444 = vadd.f32 %v443, %v400
    %445 = vst [vmem:[#allocation11 + $0x18] sm:$0xff] %v444
    // Predicated region
    $region42: #{tpu_custom_call.1} parent=1 // pred_check
      _
    $region43: #{tpu_custom_call.1} parent=1 // pred_check_branch
      %447 = sbr.rel (0) target = $region45
    $region44: #{tpu_custom_call.1} parent=1 // pred_region
      %s449 = ssub.s32 512, 512
      %450 = vsyncadd [#allocation4], %s449
      %s452 = sshll.u32 [#allocation11], 4
      %s453 = int_to_ptr.vmem [resolvable:$true] %s452
      %455 = dma.vmem_to_hbm [thread:$0]  %s453, 512, %s5, [#allocation4]
    $region45: #{tpu_custom_call.1} parent=1 // pred_fallthru
      _
    // Predicated region
    $region46: #{tpu_custom_call.1} parent=1 // pred_check
      _
    $region47: #{tpu_custom_call.1} parent=1 // pred_check_branch
      %457 = sbr.rel (0) target = $region49
    $region48: #{tpu_custom_call.1} parent=1 // pred_region
      %458 = dma.done [#allocation4], 512
    $region49: #{tpu_custom_call.1} parent=1 // pred_fallthru
      _
    %459 = vsyncpa [#allocation3], 1
    %460 = vsyncpa [#allocation6], 1
    %461 = vsyncpa [#allocation9], 1
    %462 = vsyncpa [#allocation4], 1

</llo_original>
